<compile_context>
chip_gen: v7x
topology: tpu7x:2x2x1
jax: 0.10.0
libtpu: 0.0.40
codegen_flags: <defaults>
</compile_context>

<pallas_src>
import math
import functools

import jax
import jax.numpy as jnp
import numpy as np
from jax.experimental import pallas as pl
from jax.experimental.pallas import tpu as pltpu


# ----------------------------- fused Pallas kernel -----------------------------

def induction_head_kernel(x_ref, wqkv1_ref, rpe1_ref, wqkv2_ref, rpe2_ref,
                          wo_ref, bo_ref, out_ref,
                          *, num_heads1, num_heads2, d_model, max_position):
    """One batch element: x (1,S,D) -> logits (1,S,V_padded)."""
    S = x_ref.shape[1]
    NEG = jnp.float32(-1.0e9)

    # Index masks built once and shared by both attention layers (hoisted out of head loops).
    row = jax.lax.broadcasted_iota(jnp.int32, (S, S), 0)      # i
    col = jax.lax.broadcasted_iota(jnp.int32, (S, S), 1)      # j
    future = col > row                                         # masked_fill(j > i, -1e9)
    rpe_masked = (col >= row) | ((row - col) >= max_position)  # dist>=0 or |dist|>=max_position
    rpe_idx = jnp.clip(row - col - 1, 0, max_position - 1)     # == (-clamp(dist,-max,-1)) - 1

    def rpe_bias(rpe_ref):
        # Gather from the tiny SMEM table via static selects (max_position is small & static).
        vals = jnp.zeros((S, S), jnp.float32)
        for p in range(max_position):
            vals = jnp.where(rpe_idx == p, rpe_ref[p], vals)
        return jnp.where(rpe_masked, NEG, vals)

    def mhsa(xin, wqkv_ref, rpe_ref, num_heads, d_head):
        # One wide bf16 matmul produces Q, K and V of every head (fp32 accumulation on MXU).
        qkv = jnp.dot(xin.astype(jnp.bfloat16), wqkv_ref[...],
                      preferred_element_type=jnp.float32)          # (S, 3*H*d_head)
        bias = rpe_bias(rpe_ref)
        inv_sqrt_d = jnp.float32(1.0 / math.sqrt(d_head))
        hd = num_heads * d_head
        outs = []
        for h in range(num_heads):                                  # static unroll, few heads
            q = qkv[:, h * d_head:(h + 1) * d_head].astype(jnp.bfloat16)
            k = qkv[:, hd + h * d_head: hd + (h + 1) * d_head].astype(jnp.bfloat16)
            v = qkv[:, 2 * hd + h * d_head: 2 * hd + (h + 1) * d_head].astype(jnp.bfloat16)
            # scores = q @ k^T / sqrt(d)  (fp32 accumulate, fp32 masking & softmax)
            s = jax.lax.dot_general(q, k, (((1,), (1,)), ((), ())),
                                    preferred_element_type=jnp.float32) * inv_sqrt_d
            s = jnp.where(future, NEG, s) + bias
            s = s - jnp.max(s, axis=-1, keepdims=True)
            p = jnp.exp(s)
            p = p * pl.reciprocal(jnp.sum(p, axis=-1, keepdims=True), approx=True)
            outs.append(jnp.dot(p.astype(jnp.bfloat16), v,
                                preferred_element_type=jnp.float32))
        return outs

    x = x_ref[0]                                    # (S, D) fp32
    d2 = d_model * (1 + num_heads1)

    # Layer 1 + residual concat — stays in registers/VMEM, never touches HBM.
    x1 = jnp.concatenate([x] + mhsa(x, wqkv1_ref, rpe1_ref, num_heads1, d_model), axis=-1)
    # Layer 2 + residual concat.
    x2 = jnp.concatenate([x1] + mhsa(x1, wqkv2_ref, rpe2_ref, num_heads2, d2), axis=-1)

    # Output projection onto the lane-padded vocab (lane-dense store).
    logits = jnp.dot(x2.astype(jnp.bfloat16), wo_ref[...],
                     preferred_element_type=jnp.float32) + bo_ref[...]
    out_ref[0] = logits.astype(out_ref.dtype)


# ----------------------------- wrapper -----------------------------

def induction_head_forward(x, params, *, num_heads1, num_heads2, max_position, vocab_size):
    B, S, D = x.shape
    D2 = D * (1 + num_heads1)
    Df = D2 * (1 + num_heads2)

    # Fuse the per-layer Q/K/V weights into one wide bf16 operand each (halves DMA bytes).
    wqkv1 = jnp.concatenate([params["wq1"], params["wk1"], params["wv1"]], axis=1
                            ).astype(jnp.bfloat16)                        # (D, 3*H1*D)
    wqkv2 = jnp.concatenate([params["wq2"], params["wk2"], params["wv2"]], axis=1
                            ).astype(jnp.bfloat16)                        # (D2, 3*H2*D2)

    # Lane-dense output: pad the vocab axis up to a multiple of 128 lanes.
    Vp = max(128, ((vocab_size + 127) // 128) * 128)
    wo = jnp.zeros((Df, Vp), jnp.bfloat16).at[:, :vocab_size].set(
        params["wo"].astype(jnp.bfloat16))
    bo = jnp.zeros((1, Vp), jnp.float32).at[:, :vocab_size].set(
        params["bo"].astype(jnp.float32))

    rpe1 = params["rpe1"].astype(jnp.float32)     # (max_position,) -> SMEM
    rpe2 = params["rpe2"].astype(jnp.float32)

    kernel = functools.partial(
        induction_head_kernel,
        num_heads1=num_heads1, num_heads2=num_heads2,
        d_model=D, max_position=max_position)

    out = pl.pallas_call(
        kernel,
        out_shape=jax.ShapeDtypeStruct((B, S, Vp), jnp.float32),
        grid=(B,),
        in_specs=[
            pl.BlockSpec((1, S, D), lambda b: (b, 0, 0)),
            pl.BlockSpec((D, 3 * num_heads1 * D), lambda b: (0, 0)),
            pl.BlockSpec(memory_space=pltpu.MemorySpace.SMEM),          # rpe1 table
            pl.BlockSpec((D2, 3 * num_heads2 * D2), lambda b: (0, 0)),
            pl.BlockSpec(memory_space=pltpu.MemorySpace.SMEM),          # rpe2 table
            pl.BlockSpec((Df, Vp), lambda b: (0, 0)),
            pl.BlockSpec((1, Vp), lambda b: (0, 0)),
        ],
        out_specs=pl.BlockSpec((1, S, Vp), lambda b: (b, 0, 0)),
        compiler_params=pltpu.CompilerParams(
            dimension_semantics=("parallel",),
            vmem_limit_bytes=32 * 1024 * 1024,
        ),
    )(x.astype(jnp.float32), wqkv1, rpe1, wqkv2, rpe2, wo, bo)

    return out[..., :vocab_size]


# ----------------------------- pure-JAX references -----------------------------

def _rpe_bias_ref(rel_emb, seq, max_position):
    i = jnp.arange(seq)[:, None]
    j = jnp.arange(seq)[None, :]
    dist = j - i
    idx = jnp.clip(i - j - 1, 0, max_position - 1)
    vals = rel_emb[idx]
    mask = (jnp.abs(dist) >= max_position) | (dist >= 0)
    return jnp.where(mask, jnp.float32(-1.0e9), vals).astype(jnp.float32)


def _forward_ref_fp32(x, params, *, num_heads1, num_heads2, max_position):
    """Full-fp32 reference matching the PyTorch module exactly."""
    def mhsa(xin, wq, wk, wv, rpe, H):
        S, dh = xin.shape[1], wq.shape[0]
        bias = _rpe_bias_ref(rpe, S, max_position)
        i = jnp.arange(S)[:, None]; j = jnp.arange(S)[None, :]
        outs = []
        for h in range(H):
            sl = slice(h * dh, (h + 1) * dh)
            q, k, v = xin @ wq[:, sl], xin @ wk[:, sl], xin @ wv[:, sl]
            s = jnp.einsum("bqd,bkd->bqk", q, k) / math.sqrt(dh)
            s = jnp.where(j > i, -1.0e9, s) + bias[None]
            outs.append(jnp.einsum("bqk,bkd->bqd", jax.nn.softmax(s, axis=-1), v))
        return jnp.concatenate(outs, axis=-1)

    a1 = mhsa(x, params["wq1"], params["wk1"], params["wv1"], params["rpe1"], num_heads1)
    x1 = jnp.concatenate([x, a1], axis=-1)
    a2 = mhsa(x1, params["wq2"], params["wk2"], params["wv2"], params["rpe2"], num_heads2)
    x2 = jnp.concatenate([x1, a2], axis=-1)
    return x2 @ params["wo"] + params["bo"]


def _forward_match(x, params, *, num_heads1, num_heads2, max_position):
    """Reference that mirrors the kernel arithmetic (bf16 MXU operands, fp32 accumulate)."""
    r = lambda a: a.astype(jnp.bfloat16).astype(jnp.float32)

    def mhsa(xin, wq, wk, wv, rpe, H):
        S, dh = xin.shape[1], wq.shape[0]
        wqkv = r(jnp.concatenate([wq, wk, wv], axis=1))
        qkv = jnp.einsum("bsd,df->bsf", r(xin), wqkv)
        i = jnp.arange(S)[:, None]; j = jnp.arange(S)[None, :]
        bias = jnp.where((j >= i) | ((i - j) >= max_position), -1.0e9,
                         rpe[jnp.clip(i - j - 1, 0, max_position - 1)]).astype(jnp.float32)
        hd = H * dh
        outs = []
        for h in range(H):
            q = r(qkv[..., h * dh:(h + 1) * dh])
            k = r(qkv[..., hd + h * dh: hd + (h + 1) * dh])
            v = r(qkv[..., 2 * hd + h * dh: 2 * hd + (h + 1) * dh])
            s = jnp.einsum("bqd,bkd->bqk", q, k) * (1.0 / math.sqrt(dh))
            s = jnp.where((j > i)[None], -1.0e9, s) + bias[None]
            outs.append(jnp.einsum("bqk,bkd->bqd", r(jax.nn.softmax(s, axis=-1)), v))
        return jnp.concatenate(outs, axis=-1)

    a1 = mhsa(x, params["wq1"], params["wk1"], params["wv1"], params["rpe1"], num_heads1)
    x1 = jnp.concatenate([x, a1], axis=-1)
    a2 = mhsa(x1, params["wq2"], params["wk2"], params["wv2"], params["rpe2"], num_heads2)
    x2 = jnp.concatenate([x1, a2], axis=-1)
    return jnp.einsum("bsf,fv->bsv", r(x2), r(params["wo"])) + params["bo"]


# ----------------------------- main -----------------------------

if __name__ == "__main__":
    B, S = 2, 8
    d_model = 32
    num_heads1, num_heads2 = 2, 2
    max_position = 4
    vocab_size = 16

    d2 = d_model * (1 + num_heads1)          # 96
    d_final = d2 * (1 + num_heads2)          # 288

    key = jax.random.PRNGKey(0)
    ks = jax.random.split(key, 10)
    scale = 0.05
    params = {
        "wq1": scale * jax.random.normal(ks[0], (d_model, num_heads1 * d_model), jnp.float32),
        "wk1": scale * jax.random.normal(ks[1], (d_model, num_heads1 * d_model), jnp.float32),
        "wv1": scale * jax.random.normal(ks[2], (d_model, num_heads1 * d_model), jnp.float32),
        "rpe1": scale * jax.random.normal(ks[3], (max_position,), jnp.float32),
        "wq2": scale * jax.random.normal(ks[4], (d2, num_heads2 * d2), jnp.float32),
        "wk2": scale * jax.random.normal(ks[5], (d2, num_heads2 * d2), jnp.float32),
        "wv2": scale * jax.random.normal(ks[6], (d2, num_heads2 * d2), jnp.float32),
        "rpe2": scale * jax.random.normal(ks[7], (max_position,), jnp.float32),
        "wo": scale * jax.random.normal(ks[8], (d_final, vocab_size), jnp.float32),
        "bo": scale * jax.random.normal(ks[9], (vocab_size,), jnp.float32),
    }

    x = jax.random.normal(jax.random.PRNGKey(42), (B, S, d_model), jnp.float32)

    fwd = jax.jit(functools.partial(
        induction_head_forward,
        num_heads1=num_heads1, num_heads2=num_heads2,
        max_position=max_position, vocab_size=vocab_size))

    logits = fwd(x, params)
    jax.block_until_ready(logits)
    assert logits.shape == (B, S, vocab_size)

    # Tight check against a reference that mirrors the kernel's bf16-operand / fp32-accumulate math.
    match = _forward_match(x, params, num_heads1=num_heads1, num_heads2=num_heads2,
                           max_position=max_position)
    np.testing.assert_allclose(np.asarray(logits), np.asarray(match), rtol=2e-2, atol=2e-2)

    # Loose sanity check against the full-fp32 PyTorch-equivalent reference.
    ref = _forward_ref_fp32(x, params, num_heads1=num_heads1, num_heads2=num_heads2,
                            max_position=max_position)
    np.testing.assert_allclose(np.asarray(logits), np.asarray(ref), rtol=1e-1, atol=1e-1)

    print("KERNEL_OK")
</pallas_src>

<mosaic_0001>
module attributes {stable_mosaic.version = 11 : i64} {
  func.func @induction_head_kernel(%arg0: i32, %arg1: memref<1x8x32xf32, #tpu.memory_space<vmem>>, %arg2: memref<32x192xbf16, #tpu.memory_space<vmem>>, %arg3: memref<4xf32, #tpu.memory_space<smem>>, %arg4: memref<96x576xbf16, #tpu.memory_space<vmem>>, %arg5: memref<4xf32, #tpu.memory_space<smem>>, %arg6: memref<288x128xbf16, #tpu.memory_space<vmem>>, %arg7: memref<1x128xf32, #tpu.memory_space<vmem>>, %arg8: memref<1x8x128xf32, #tpu.memory_space<vmem>>) attributes {dimension_semantics = [#tpu.dimension_semantics<parallel>], iteration_bounds = array<i64: 2>, scalar_prefetch = 0 : i64, scratch_operands = 0 : i64, tpu.core_type = #tpu.core_type<tc>, window_params = [{transform_indices = @transform_0, window_bounds = array<i64: 1, 8, 32>}, {pipeline_mode = #tpu.pipeline_mode<synchronous>, transform_indices = @transform_1, window_bounds = array<i64: 32, 192>}, {transform_indices = @transform_2, window_bounds = array<i64: 4>}, {pipeline_mode = #tpu.pipeline_mode<synchronous>, transform_indices = @transform_3, window_bounds = array<i64: 96, 576>}, {transform_indices = @transform_4, window_bounds = array<i64: 4>}, {pipeline_mode = #tpu.pipeline_mode<synchronous>, transform_indices = @transform_5, window_bounds = array<i64: 288, 128>}, {pipeline_mode = #tpu.pipeline_mode<synchronous>, transform_indices = @transform_6, window_bounds = array<i64: 1, 128>}, {transform_indices = @transform_7, window_bounds = array<i64: 1, 8, 128>}]} {
    %0 = tpu.iota {dimensions = array<i32: 0>} : vector<8x8xi32>
    %1 = tpu.iota {dimensions = array<i32: 1>} : vector<8x8xi32>
    %2 = arith.cmpi sgt, %1, %0 : vector<8x8xi32>
    %3 = arith.cmpi sge, %1, %0 : vector<8x8xi32>
    %4 = arith.subi %0, %1 : vector<8x8xi32>
    %c4_i32 = arith.constant 4 : i32
    %5 = vector.broadcast %c4_i32 : i32 to vector<8x8xi32>
    %6 = arith.cmpi sge, %4, %5 : vector<8x8xi32>
    %7 = arith.ori %3, %6 : vector<8x8xi1>
    %8 = arith.subi %0, %1 : vector<8x8xi32>
    %c1_i32 = arith.constant 1 : i32
    %9 = vector.broadcast %c1_i32 : i32 to vector<8x8xi32>
    %10 = arith.subi %8, %9 : vector<8x8xi32>
    %c0_i32 = arith.constant 0 : i32
    %c3_i32 = arith.constant 3 : i32
    %11 = vector.broadcast %c0_i32 : i32 to vector<8x8xi32>
    %12 = arith.maxsi %11, %10 : vector<8x8xi32>
    %13 = vector.broadcast %c3_i32 : i32 to vector<8x8xi32>
    %14 = arith.minsi %13, %12 : vector<8x8xi32>
    %c0 = arith.constant 0 : index
    %c0_0 = arith.constant 0 : index
    %c0_1 = arith.constant 0 : index
    %15 = vector.load %arg1[%c0, %c0_0, %c0_1] : memref<1x8x32xf32, #tpu.memory_space<vmem>>, vector<1x8x32xf32>
    %16 = vector.shape_cast %15 : vector<1x8x32xf32> to vector<8x32xf32>
    %17 = arith.truncf %16 : vector<8x32xf32> to vector<8x32xbf16>
    %c0_2 = arith.constant 0 : index
    %c0_3 = arith.constant 0 : index
    %18 = vector.load %arg2[%c0_2, %c0_3] : memref<32x192xbf16, #tpu.memory_space<vmem>>, vector<32x192xbf16>
    %cst = arith.constant dense<0.000000e+00> : vector<8x192xf32>
    %19 = tpu.matmul %17, %18, %cst {dimension_numbers = #tpu.dot_dimension_numbers<[1], [0], [0], [1], [0, 0, 1, 1], [], []>} : vector<8x32xbf16>, vector<32x192xbf16>, vector<8x192xf32> -> vector<8x192xf32>
    %cst_4 = arith.constant 0.000000e+00 : f32
    %20 = vector.broadcast %cst_4 : f32 to vector<8x8xf32>
    %c0_i32_5 = arith.constant 0 : i32
    %21 = vector.broadcast %c0_i32_5 : i32 to vector<8x8xi32>
    %22 = arith.cmpi eq, %14, %21 : vector<8x8xi32>
    %c0_6 = arith.constant 0 : index
    %23 = memref.load %arg3[%c0_6] : memref<4xf32, #tpu.memory_space<smem>>
    %24 = vector.broadcast %23 : f32 to vector<8x8xf32>
    %25 = arith.select %22, %24, %20 : vector<8x8xi1>, vector<8x8xf32>
    %c1_i32_7 = arith.constant 1 : i32
    %26 = vector.broadcast %c1_i32_7 : i32 to vector<8x8xi32>
    %27 = arith.cmpi eq, %14, %26 : vector<8x8xi32>
    %c1 = arith.constant 1 : index
    %28 = memref.load %arg3[%c1] : memref<4xf32, #tpu.memory_space<smem>>
    %29 = vector.broadcast %28 : f32 to vector<8x8xf32>
    %30 = arith.select %27, %29, %25 : vector<8x8xi1>, vector<8x8xf32>
    %c2_i32 = arith.constant 2 : i32
    %31 = vector.broadcast %c2_i32 : i32 to vector<8x8xi32>
    %32 = arith.cmpi eq, %14, %31 : vector<8x8xi32>
    %c2 = arith.constant 2 : index
    %33 = memref.load %arg3[%c2] : memref<4xf32, #tpu.memory_space<smem>>
    %34 = vector.broadcast %33 : f32 to vector<8x8xf32>
    %35 = arith.select %32, %34, %30 : vector<8x8xi1>, vector<8x8xf32>
    %c3_i32_8 = arith.constant 3 : i32
    %36 = vector.broadcast %c3_i32_8 : i32 to vector<8x8xi32>
    %37 = arith.cmpi eq, %14, %36 : vector<8x8xi32>
    %c3 = arith.constant 3 : index
    %38 = memref.load %arg3[%c3] : memref<4xf32, #tpu.memory_space<smem>>
    %39 = vector.broadcast %38 : f32 to vector<8x8xf32>
    %40 = arith.select %37, %39, %35 : vector<8x8xi1>, vector<8x8xf32>
    %cst_9 = arith.constant -1.000000e+09 : f32
    %41 = vector.broadcast %cst_9 : f32 to vector<8x8xf32>
    %42 = arith.select %7, %41, %40 : vector<8x8xi1>, vector<8x8xf32>
    %43 = vector.extract_strided_slice %19 {offsets = [0, 0], sizes = [8, 32], strides = [1, 1]} : vector<8x192xf32> to vector<8x32xf32>
    %44 = arith.truncf %43 : vector<8x32xf32> to vector<8x32xbf16>
    %45 = vector.extract_strided_slice %19 {offsets = [0, 64], sizes = [8, 32], strides = [1, 1]} : vector<8x192xf32> to vector<8x32xf32>
    %46 = arith.truncf %45 : vector<8x32xf32> to vector<8x32xbf16>
    %47 = vector.extract_strided_slice %19 {offsets = [0, 128], sizes = [8, 32], strides = [1, 1]} : vector<8x192xf32> to vector<8x32xf32>
    %48 = arith.truncf %47 : vector<8x32xf32> to vector<8x32xbf16>
    %cst_10 = arith.constant dense<0.000000e+00> : vector<8x8xf32>
    %49 = tpu.matmul %44, %46, %cst_10 {dimension_numbers = #tpu.dot_dimension_numbers<[1], [1], [0], [0], [0, 0, 1, 0], [], []>} : vector<8x32xbf16>, vector<8x32xbf16>, vector<8x8xf32> -> vector<8x8xf32>
    %cst_11 = arith.constant 0.176776692 : f32
    %50 = vector.broadcast %cst_11 : f32 to vector<8x8xf32>
    %51 = arith.mulf %49, %50 : vector<8x8xf32>
    %cst_12 = arith.constant -1.000000e+09 : f32
    %52 = vector.broadcast %cst_12 : f32 to vector<8x8xf32>
    %53 = arith.select %2, %52, %51 : vector<8x8xi1>, vector<8x8xf32>
    %54 = arith.addf %53, %42 : vector<8x8xf32>
    %cst_13 = arith.constant dense<0xFF800000> : vector<8xf32>
    %55 = vector.multi_reduction <maximumf>, %54, %cst_13 [1] : vector<8x8xf32> to vector<8xf32>
    %56 = vector.shape_cast %55 : vector<8xf32> to vector<8x1xf32>
    %57 = vector.broadcast %56 : vector<8x1xf32> to vector<8x8xf32>
    %58 = arith.subf %54, %57 : vector<8x8xf32>
    %59 = math.exp %58 : vector<8x8xf32>
    %cst_14 = arith.constant dense<0.000000e+00> : vector<8xf32>
    %60 = vector.multi_reduction <add>, %59, %cst_14 [1] : vector<8x8xf32> to vector<8xf32>
    %61 = vector.shape_cast %60 : vector<8xf32> to vector<8x1xf32>
    %62 = tpu.reciprocal %61 {approx = true} : vector<8x1xf32> -> vector<8x1xf32>
    %63 = vector.broadcast %62 : vector<8x1xf32> to vector<8x8xf32>
    %64 = arith.mulf %59, %63 : vector<8x8xf32>
    %65 = arith.truncf %64 : vector<8x8xf32> to vector<8x8xbf16>
    %cst_15 = arith.constant dense<0.000000e+00> : vector<8x32xf32>
    %66 = tpu.matmul %65, %48, %cst_15 {dimension_numbers = #tpu.dot_dimension_numbers<[1], [0], [0], [1], [0, 0, 1, 1], [], []>} : vector<8x8xbf16>, vector<8x32xbf16>, vector<8x32xf32> -> vector<8x32xf32>
    %67 = vector.extract_strided_slice %19 {offsets = [0, 32], sizes = [8, 32], strides = [1, 1]} : vector<8x192xf32> to vector<8x32xf32>
    %68 = arith.truncf %67 : vector<8x32xf32> to vector<8x32xbf16>
    %69 = vector.extract_strided_slice %19 {offsets = [0, 96], sizes = [8, 32], strides = [1, 1]} : vector<8x192xf32> to vector<8x32xf32>
    %70 = arith.truncf %69 : vector<8x32xf32> to vector<8x32xbf16>
    %71 = vector.extract_strided_slice %19 {offsets = [0, 160], sizes = [8, 32], strides = [1, 1]} : vector<8x192xf32> to vector<8x32xf32>
    %72 = arith.truncf %71 : vector<8x32xf32> to vector<8x32xbf16>
    %cst_16 = arith.constant dense<0.000000e+00> : vector<8x8xf32>
    %73 = tpu.matmul %68, %70, %cst_16 {dimension_numbers = #tpu.dot_dimension_numbers<[1], [1], [0], [0], [0, 0, 1, 0], [], []>} : vector<8x32xbf16>, vector<8x32xbf16>, vector<8x8xf32> -> vector<8x8xf32>
    %cst_17 = arith.constant 0.176776692 : f32
    %74 = vector.broadcast %cst_17 : f32 to vector<8x8xf32>
    %75 = arith.mulf %73, %74 : vector<8x8xf32>
    %cst_18 = arith.constant -1.000000e+09 : f32
    %76 = vector.broadcast %cst_18 : f32 to vector<8x8xf32>
    %77 = arith.select %2, %76, %75 : vector<8x8xi1>, vector<8x8xf32>
    %78 = arith.addf %77, %42 : vector<8x8xf32>
    %cst_19 = arith.constant dense<0xFF800000> : vector<8xf32>
    %79 = vector.multi_reduction <maximumf>, %78, %cst_19 [1] : vector<8x8xf32> to vector<8xf32>
    %80 = vector.shape_cast %79 : vector<8xf32> to vector<8x1xf32>
    %81 = vector.broadcast %80 : vector<8x1xf32> to vector<8x8xf32>
    %82 = arith.subf %78, %81 : vector<8x8xf32>
    %83 = math.exp %82 : vector<8x8xf32>
    %cst_20 = arith.constant dense<0.000000e+00> : vector<8xf32>
    %84 = vector.multi_reduction <add>, %83, %cst_20 [1] : vector<8x8xf32> to vector<8xf32>
    %85 = vector.shape_cast %84 : vector<8xf32> to vector<8x1xf32>
    %86 = tpu.reciprocal %85 {approx = true} : vector<8x1xf32> -> vector<8x1xf32>
    %87 = vector.broadcast %86 : vector<8x1xf32> to vector<8x8xf32>
    %88 = arith.mulf %83, %87 : vector<8x8xf32>
    %89 = arith.truncf %88 : vector<8x8xf32> to vector<8x8xbf16>
    %cst_21 = arith.constant dense<0.000000e+00> : vector<8x32xf32>
    %90 = tpu.matmul %89, %72, %cst_21 {dimension_numbers = #tpu.dot_dimension_numbers<[1], [0], [0], [1], [0, 0, 1, 1], [], []>} : vector<8x8xbf16>, vector<8x32xbf16>, vector<8x32xf32> -> vector<8x32xf32>
    %91 = tpu.concatenate %16, %66, %90 in 1 : vector<8x32xf32>, vector<8x32xf32>, vector<8x32xf32> -> vector<8x96xf32>
    %92 = arith.truncf %91 : vector<8x96xf32> to vector<8x96xbf16>
    %c0_22 = arith.constant 0 : index
    %c0_23 = arith.constant 0 : index
    %93 = vector.load %arg4[%c0_22, %c0_23] : memref<96x576xbf16, #tpu.memory_space<vmem>>, vector<96x576xbf16>
    %cst_24 = arith.constant dense<0.000000e+00> : vector<8x576xf32>
    %94 = tpu.matmul %92, %93, %cst_24 {dimension_numbers = #tpu.dot_dimension_numbers<[1], [0], [0], [1], [0, 0, 1, 1], [], []>} : vector<8x96xbf16>, vector<96x576xbf16>, vector<8x576xf32> -> vector<8x576xf32>
    %cst_25 = arith.constant 0.000000e+00 : f32
    %95 = vector.broadcast %cst_25 : f32 to vector<8x8xf32>
    %c0_i32_26 = arith.constant 0 : i32
    %96 = vector.broadcast %c0_i32_26 : i32 to vector<8x8xi32>
    %97 = arith.cmpi eq, %14, %96 : vector<8x8xi32>
    %c0_27 = arith.constant 0 : index
    %98 = memref.load %arg5[%c0_27] : memref<4xf32, #tpu.memory_space<smem>>
    %99 = vector.broadcast %98 : f32 to vector<8x8xf32>
    %100 = arith.select %97, %99, %95 : vector<8x8xi1>, vector<8x8xf32>
    %c1_i32_28 = arith.constant 1 : i32
    %101 = vector.broadcast %c1_i32_28 : i32 to vector<8x8xi32>
    %102 = arith.cmpi eq, %14, %101 : vector<8x8xi32>
    %c1_29 = arith.constant 1 : index
    %103 = memref.load %arg5[%c1_29] : memref<4xf32, #tpu.memory_space<smem>>
    %104 = vector.broadcast %103 : f32 to vector<8x8xf32>
    %105 = arith.select %102, %104, %100 : vector<8x8xi1>, vector<8x8xf32>
    %c2_i32_30 = arith.constant 2 : i32
    %106 = vector.broadcast %c2_i32_30 : i32 to vector<8x8xi32>
    %107 = arith.cmpi eq, %14, %106 : vector<8x8xi32>
    %c2_31 = arith.constant 2 : index
    %108 = memref.load %arg5[%c2_31] : memref<4xf32, #tpu.memory_space<smem>>
    %109 = vector.broadcast %108 : f32 to vector<8x8xf32>
    %110 = arith.select %107, %109, %105 : vector<8x8xi1>, vector<8x8xf32>
    %c3_i32_32 = arith.constant 3 : i32
    %111 = vector.broadcast %c3_i32_32 : i32 to vector<8x8xi32>
    %112 = arith.cmpi eq, %14, %111 : vector<8x8xi32>
    %c3_33 = arith.constant 3 : index
    %113 = memref.load %arg5[%c3_33] : memref<4xf32, #tpu.memory_space<smem>>
    %114 = vector.broadcast %113 : f32 to vector<8x8xf32>
    %115 = arith.select %112, %114, %110 : vector<8x8xi1>, vector<8x8xf32>
    %cst_34 = arith.constant -1.000000e+09 : f32
    %116 = vector.broadcast %cst_34 : f32 to vector<8x8xf32>
    %117 = arith.select %7, %116, %115 : vector<8x8xi1>, vector<8x8xf32>
    %118 = vector.extract_strided_slice %94 {offsets = [0, 0], sizes = [8, 96], strides = [1, 1]} : vector<8x576xf32> to vector<8x96xf32>
    %119 = arith.truncf %118 : vector<8x96xf32> to vector<8x96xbf16>
    %120 = vector.extract_strided_slice %94 {offsets = [0, 192], sizes = [8, 96], strides = [1, 1]} : vector<8x576xf32> to vector<8x96xf32>
    %121 = arith.truncf %120 : vector<8x96xf32> to vector<8x96xbf16>
    %122 = vector.extract_strided_slice %94 {offsets = [0, 384], sizes = [8, 96], strides = [1, 1]} : vector<8x576xf32> to vector<8x96xf32>
    %123 = arith.truncf %122 : vector<8x96xf32> to vector<8x96xbf16>
    %cst_35 = arith.constant dense<0.000000e+00> : vector<8x8xf32>
    %124 = tpu.matmul %119, %121, %cst_35 {dimension_numbers = #tpu.dot_dimension_numbers<[1], [1], [0], [0], [0, 0, 1, 0], [], []>} : vector<8x96xbf16>, vector<8x96xbf16>, vector<8x8xf32> -> vector<8x8xf32>
    %cst_36 = arith.constant 0.102062076 : f32
    %125 = vector.broadcast %cst_36 : f32 to vector<8x8xf32>
    %126 = arith.mulf %124, %125 : vector<8x8xf32>
    %cst_37 = arith.constant -1.000000e+09 : f32
    %127 = vector.broadcast %cst_37 : f32 to vector<8x8xf32>
    %128 = arith.select %2, %127, %126 : vector<8x8xi1>, vector<8x8xf32>
    %129 = arith.addf %128, %117 : vector<8x8xf32>
    %cst_38 = arith.constant dense<0xFF800000> : vector<8xf32>
    %130 = vector.multi_reduction <maximumf>, %129, %cst_38 [1] : vector<8x8xf32> to vector<8xf32>
    %131 = vector.shape_cast %130 : vector<8xf32> to vector<8x1xf32>
    %132 = vector.broadcast %131 : vector<8x1xf32> to vector<8x8xf32>
    %133 = arith.subf %129, %132 : vector<8x8xf32>
    %134 = math.exp %133 : vector<8x8xf32>
    %cst_39 = arith.constant dense<0.000000e+00> : vector<8xf32>
    %135 = vector.multi_reduction <add>, %134, %cst_39 [1] : vector<8x8xf32> to vector<8xf32>
    %136 = vector.shape_cast %135 : vector<8xf32> to vector<8x1xf32>
    %137 = tpu.reciprocal %136 {approx = true} : vector<8x1xf32> -> vector<8x1xf32>
    %138 = vector.broadcast %137 : vector<8x1xf32> to vector<8x8xf32>
    %139 = arith.mulf %134, %138 : vector<8x8xf32>
    %140 = arith.truncf %139 : vector<8x8xf32> to vector<8x8xbf16>
    %cst_40 = arith.constant dense<0.000000e+00> : vector<8x96xf32>
    %141 = tpu.matmul %140, %123, %cst_40 {dimension_numbers = #tpu.dot_dimension_numbers<[1], [0], [0], [1], [0, 0, 1, 1], [], []>} : vector<8x8xbf16>, vector<8x96xbf16>, vector<8x96xf32> -> vector<8x96xf32>
    %142 = vector.extract_strided_slice %94 {offsets = [0, 96], sizes = [8, 96], strides = [1, 1]} : vector<8x576xf32> to vector<8x96xf32>
    %143 = arith.truncf %142 : vector<8x96xf32> to vector<8x96xbf16>
    %144 = vector.extract_strided_slice %94 {offsets = [0, 288], sizes = [8, 96], strides = [1, 1]} : vector<8x576xf32> to vector<8x96xf32>
    %145 = arith.truncf %144 : vector<8x96xf32> to vector<8x96xbf16>
    %146 = vector.extract_strided_slice %94 {offsets = [0, 480], sizes = [8, 96], strides = [1, 1]} : vector<8x576xf32> to vector<8x96xf32>
    %147 = arith.truncf %146 : vector<8x96xf32> to vector<8x96xbf16>
    %cst_41 = arith.constant dense<0.000000e+00> : vector<8x8xf32>
    %148 = tpu.matmul %143, %145, %cst_41 {dimension_numbers = #tpu.dot_dimension_numbers<[1], [1], [0], [0], [0, 0, 1, 0], [], []>} : vector<8x96xbf16>, vector<8x96xbf16>, vector<8x8xf32> -> vector<8x8xf32>
    %cst_42 = arith.constant 0.102062076 : f32
    %149 = vector.broadcast %cst_42 : f32 to vector<8x8xf32>
    %150 = arith.mulf %148, %149 : vector<8x8xf32>
    %cst_43 = arith.constant -1.000000e+09 : f32
    %151 = vector.broadcast %cst_43 : f32 to vector<8x8xf32>
    %152 = arith.select %2, %151, %150 : vector<8x8xi1>, vector<8x8xf32>
    %153 = arith.addf %152, %117 : vector<8x8xf32>
    %cst_44 = arith.constant dense<0xFF800000> : vector<8xf32>
    %154 = vector.multi_reduction <maximumf>, %153, %cst_44 [1] : vector<8x8xf32> to vector<8xf32>
    %155 = vector.shape_cast %154 : vector<8xf32> to vector<8x1xf32>
    %156 = vector.broadcast %155 : vector<8x1xf32> to vector<8x8xf32>
    %157 = arith.subf %153, %156 : vector<8x8xf32>
    %158 = math.exp %157 : vector<8x8xf32>
    %cst_45 = arith.constant dense<0.000000e+00> : vector<8xf32>
    %159 = vector.multi_reduction <add>, %158, %cst_45 [1] : vector<8x8xf32> to vector<8xf32>
    %160 = vector.shape_cast %159 : vector<8xf32> to vector<8x1xf32>
    %161 = tpu.reciprocal %160 {approx = true} : vector<8x1xf32> -> vector<8x1xf32>
    %162 = vector.broadcast %161 : vector<8x1xf32> to vector<8x8xf32>
    %163 = arith.mulf %158, %162 : vector<8x8xf32>
    %164 = arith.truncf %163 : vector<8x8xf32> to vector<8x8xbf16>
    %cst_46 = arith.constant dense<0.000000e+00> : vector<8x96xf32>
    %165 = tpu.matmul %164, %147, %cst_46 {dimension_numbers = #tpu.dot_dimension_numbers<[1], [0], [0], [1], [0, 0, 1, 1], [], []>} : vector<8x8xbf16>, vector<8x96xbf16>, vector<8x96xf32> -> vector<8x96xf32>
    %166 = tpu.concatenate %91, %141, %165 in 1 : vector<8x96xf32>, vector<8x96xf32>, vector<8x96xf32> -> vector<8x288xf32>
    %167 = arith.truncf %166 : vector<8x288xf32> to vector<8x288xbf16>
    %c0_47 = arith.constant 0 : index
    %c0_48 = arith.constant 0 : index
    %168 = vector.load %arg6[%c0_47, %c0_48] : memref<288x128xbf16, #tpu.memory_space<vmem>>, vector<288x128xbf16>
    %cst_49 = arith.constant dense<0.000000e+00> : vector<8x128xf32>
    %169 = tpu.matmul %167, %168, %cst_49 {dimension_numbers = #tpu.dot_dimension_numbers<[1], [0], [0], [1], [0, 0, 1, 1], [], []>} : vector<8x288xbf16>, vector<288x128xbf16>, vector<8x128xf32> -> vector<8x128xf32>
    %c0_50 = arith.constant 0 : index
    %c0_51 = arith.constant 0 : index
    %170 = vector.load %arg7[%c0_50, %c0_51] : memref<1x128xf32, #tpu.memory_space<vmem>>, vector<1x128xf32>
    %171 = vector.broadcast %170 : vector<1x128xf32> to vector<8x128xf32>
    %172 = arith.addf %169, %171 : vector<8x128xf32>
    %c0_52 = arith.constant 0 : index
    %c0_53 = arith.constant 0 : index
    %c0_54 = arith.constant 0 : index
    %173 = vector.load %arg8[%c0_52, %c0_53, %c0_54] : memref<1x8x128xf32, #tpu.memory_space<vmem>>, vector<1x8x128xf32>
    %174 = vector.shape_cast %173 : vector<1x8x128xf32> to vector<8x128xf32>
    %175 = vector.shape_cast %172 : vector<8x128xf32> to vector<1x8x128xf32>
    tpu.vector_store %arg8[%c0_52, %c0_53, %c0_54], %175 {strides = array<i32>} : memref<1x8x128xf32, #tpu.memory_space<vmem>>, vector<1x8x128xf32>,
    return
  }
  func.func @transform_0(%arg0: i32) -> (i32, i32, i32) {
    %c0_i32 = arith.constant 0 : i32
    %c0_i32_0 = arith.constant 0 : i32
    %c0_i32_1 = arith.constant 0 : i32
    return %arg0, %c0_i32, %c0_i32_0 : i32, i32, i32
  }
  func.func @transform_1(%arg0: i32) -> (i32, i32) {
    %c0_i32 = arith.constant 0 : i32
    %c0_i32_0 = arith.constant 0 : i32
    %c0_i32_1 = arith.constant 0 : i32
    return %c0_i32, %c0_i32_0 : i32, i32
  }
  func.func @transform_2(%arg0: i32) -> i32 {
    %c0_i32 = arith.constant 0 : i32
    %c0_i32_0 = arith.constant 0 : i32
    return %c0_i32 : i32
  }
  func.func @transform_3(%arg0: i32) -> (i32, i32) {
    %c0_i32 = arith.constant 0 : i32
    %c0_i32_0 = arith.constant 0 : i32
    %c0_i32_1 = arith.constant 0 : i32
    return %c0_i32, %c0_i32_0 : i32, i32
  }
  func.func @transform_4(%arg0: i32) -> i32 {
    %c0_i32 = arith.constant 0 : i32
    %c0_i32_0 = arith.constant 0 : i32
    return %c0_i32 : i32
  }
  func.func @transform_5(%arg0: i32) -> (i32, i32) {
    %c0_i32 = arith.constant 0 : i32
    %c0_i32_0 = arith.constant 0 : i32
    %c0_i32_1 = arith.constant 0 : i32
    return %c0_i32, %c0_i32_0 : i32, i32
  }
  func.func @transform_6(%arg0: i32) -> (i32, i32) {
    %c0_i32 = arith.constant 0 : i32
    %c0_i32_0 = arith.constant 0 : i32
    %c0_i32_1 = arith.constant 0 : i32
    return %c0_i32, %c0_i32_0 : i32, i32
  }
  func.func @transform_7(%arg0: i32) -> (i32, i32, i32) {
    %c0_i32 = arith.constant 0 : i32
    %c0_i32_0 = arith.constant 0 : i32
    %c0_i32_1 = arith.constant 0 : i32
    return %arg0, %c0_i32, %c0_i32_0 : i32, i32, i32
  }
}

</mosaic_0001>

<llo_original>
// kernel: induction_head_forward.1
$region0: #{induction_head_forward.1}
  #allocation0 [shape = 'u32[]', space=smem, size = 0x4, offset = 0x4, fixed_abs, tag = 'smem constant byte address 0x4 - core index']
  #allocation1 [shape = 'u32[144,128]{1,0:T(1,128)}', space=vmem, size = 0x12000, scoped, tag = 'internal scratch']
  %s0 = inlined_call_operand.vmem [shape: f32[2,8,32], index: 0, kind: input, shape index: {}]
  %s1 = inlined_call_operand.vmem [shape: bf16[32,192], index: 1, kind: input, shape index: {}]
  %s2 = inlined_call_operand.vmem [shape: f32[4], index: 2, kind: input, shape index: {}]
  %s3 = inlined_call_operand.vmem [shape: bf16[96,576], index: 3, kind: input, shape index: {}]
  %s4 = inlined_call_operand.vmem [shape: f32[4], index: 4, kind: input, shape index: {}]
  %s5 = inlined_call_operand.vmem [shape: bf16[288,128], index: 5, kind: input, shape index: {}]
  %s6 = inlined_call_operand.vmem [shape: f32[1,128], index: 6, kind: input, shape index: {}]
  %s7 = inlined_call_operand.hbm [shape: f32[2,8,128], index: 7, kind: output, shape index: {}]
  %s8 = sld [smem:[#allocation0]]
  $region69: #{induction_head_forward.1} parent=0
    _
  %s10 = ssub.s32 1, %s8
  %s11 = scalar_select 0, %s10, %s8
  $region1: #{induction_head_forward.1} parent=0
    #allocation2 [shape = 'u8[512]{0}', space=smem, size = 0x200, scoped, tag = 'input window, operand 2, single buffered']
    #allocation3 [shape = 's32[2]{0}', space=sflag, size = 0x8, scoped, tag = 'scoped memory for induction_head_forward.1']
    #allocation4 [shape = 's32[2]{0}', space=sflag, size = 0x8, scoped, tag = 'scoped memory for induction_head_forward.1']
    #allocation5 [shape = 'u8[512]{0}', space=smem, size = 0x200, scoped, tag = 'input window, operand 4, single buffered']
    #allocation6 [shape = 's32[1]{0}', space=sflag, size = 0x4, scoped, tag = 'scoped memory for induction_head_forward.1']
    #allocation7 [shape = 'u8[8192]{0}', space=vmem, size = 0x2000, scoped, tag = 'output window, operand 0']
    %12 = vsyncpa [#allocation4], 0
    %13 = vsyncpa [#allocation6], 0
    %14 = vsyncpa [#allocation3], 0
    %s15 = scalar_lea.sflag [#allocation3], 1
    %16 = vsyncpa %s15, 0
    loop: start=0, step=1, limit=4
    $region2: #{induction_head_forward.1} parent=1 // loop_pre_header
      _
    $region3: #{induction_head_forward.1} parent=1 // loop_header
      %s18 = sphi 0, %s22
      %p19 = scmp.ge.s32.totalorder %s18, 4
      %s28 = sphi 0, %s30
      %s31 = sphi 0, %s28
      %s32 = sphi 0, %s31
      %s48 = sphi 0, %s32
      %s52 = sphi 0, %s52
      %s54 = sphi 0, %s52
      %s55 = sphi 0, %s54
      %s69 = sphi 0, %s55
      %s73 = sphi 0, %s73
      %s75 = sphi 0, %s73
      %s76 = sphi 0, %s75
      %s90 = sphi 0, %s76
      %s94 = sphi 0, %s94
      %s96 = sphi 0, %s94
      %s97 = sphi 0, %s96
      %s111 = sphi 0, %s97
      %s115 = sphi 0, %s115
      %s117 = sphi 0, %s115
      %s118 = sphi 0, %s117
      %s132 = sphi 0, %s118
      %s136 = sphi 0, %s136
      %s138 = sphi 0, %s136
      %s139 = sphi 0, %s138
      %s153 = sphi 0, %s139
      %s157 = sphi 0, %s157
      %s159 = sphi 0, %s157
      %s160 = sphi 0, %s159
      %s174 = sphi 0, %s160
      %s180 = sphi 0, %s182
      %s183 = sphi 0, %s180
      %s184 = sphi 0, %s183
      %s200 = sphi 0, %s184
    $region4: #{induction_head_forward.1} parent=1 // loop_header_branch
      %21 = sbr.rel (%p19) target = $region8
    $region5: #{induction_head_forward.1} parent=1 // loop_body
      %s23 = ssub.s32 %s18, 1
      %s24 = ssub.s32 %s18, 2
      %s25 = sadd.s32 %s18, 1
      %s26 = ssub.s32 %s18, %s25
      %p27 = scmp.eq.s32.totalorder %s26, 0
      %s29 = sadd.s32 %s28, 1
      %s30 = scalar_select %p27, %s28, %s29
      %p33 = pneg %p27
      %p34 = scmp.eq.s32.totalorder %s18, 1
      %p35 = por %p33, %p34
      %p36 = scmp.ne.s32.totalorder %s28, %s31
      %p37 = scmp.eq.s32.totalorder %s18, 0
      %p38 = por %p36, %p37
      %p39 = scmp.ne.s32.totalorder %s28, %s31
      %p40 = scmp.eq.s32.totalorder %s23, 1
      %p41 = por %p39, %p40
      %p42 = scmp.ne.s32.totalorder %s31, %s32
      %p43 = scmp.eq.s32.totalorder %s23, 0
      %p44 = por %p42, %p43
      %p45 = scmp.ne.s32.totalorder %s31, %s32
      %p46 = scmp.eq.s32.totalorder %s24, 1
      %p47 = por %p45, %p46
      %p49 = scmp.ne.s32.totalorder %s32, %s48
      %p50 = scmp.eq.s32.totalorder %s24, 0
      %p51 = por %p49, %p50
      %s53 = sadd.s32 %s52, 1
      %p56 = scmp.eq.s32.totalorder %s18, 1
      %p57 = scmp.ne.s32.totalorder %s52, %s54
      %p58 = scmp.eq.s32.totalorder %s18, 0
      %p59 = por %p57, %p58
      %p60 = scmp.ne.s32.totalorder %s52, %s54
      %p61 = scmp.eq.s32.totalorder %s23, 1
      %p62 = por %p60, %p61
      %p63 = scmp.ne.s32.totalorder %s54, %s55
      %p64 = scmp.eq.s32.totalorder %s23, 0
      %p65 = por %p63, %p64
      %p66 = scmp.ne.s32.totalorder %s54, %s55
      %p67 = scmp.eq.s32.totalorder %s24, 1
      %p68 = por %p66, %p67
      %p70 = scmp.ne.s32.totalorder %s55, %s69
      %p71 = scmp.eq.s32.totalorder %s24, 0
      %p72 = por %p70, %p71
      %s74 = sadd.s32 %s73, 1
      %p77 = scmp.eq.s32.totalorder %s18, 1
      %p78 = scmp.ne.s32.totalorder %s73, %s75
      %p79 = scmp.eq.s32.totalorder %s18, 0
      %p80 = por %p78, %p79
      %p81 = scmp.ne.s32.totalorder %s73, %s75
      %p82 = scmp.eq.s32.totalorder %s23, 1
      %p83 = por %p81, %p82
      %p84 = scmp.ne.s32.totalorder %s75, %s76
      %p85 = scmp.eq.s32.totalorder %s23, 0
      %p86 = por %p84, %p85
      %p87 = scmp.ne.s32.totalorder %s75, %s76
      %p88 = scmp.eq.s32.totalorder %s24, 1
      %p89 = por %p87, %p88
      %p91 = scmp.ne.s32.totalorder %s76, %s90
      %p92 = scmp.eq.s32.totalorder %s24, 0
      %p93 = por %p91, %p92
      %s95 = sadd.s32 %s94, 1
      %p98 = scmp.eq.s32.totalorder %s18, 1
      %p99 = scmp.ne.s32.totalorder %s94, %s96
      %p100 = scmp.eq.s32.totalorder %s18, 0
      %p101 = por %p99, %p100
      %p102 = scmp.ne.s32.totalorder %s94, %s96
      %p103 = scmp.eq.s32.totalorder %s23, 1
      %p104 = por %p102, %p103
      %p105 = scmp.ne.s32.totalorder %s96, %s97
      %p106 = scmp.eq.s32.totalorder %s23, 0
      %p107 = por %p105, %p106
      %p108 = scmp.ne.s32.totalorder %s96, %s97
      %p109 = scmp.eq.s32.totalorder %s24, 1
      %p110 = por %p108, %p109
      %p112 = scmp.ne.s32.totalorder %s97, %s111
      %p113 = scmp.eq.s32.totalorder %s24, 0
      %p114 = por %p112, %p113
      %s116 = sadd.s32 %s115, 1
      %p119 = scmp.eq.s32.totalorder %s18, 1
      %p120 = scmp.ne.s32.totalorder %s115, %s117
      %p121 = scmp.eq.s32.totalorder %s18, 0
      %p122 = por %p120, %p121
      %p123 = scmp.ne.s32.totalorder %s115, %s117
      %p124 = scmp.eq.s32.totalorder %s23, 1
      %p125 = por %p123, %p124
      %p126 = scmp.ne.s32.totalorder %s117, %s118
      %p127 = scmp.eq.s32.totalorder %s23, 0
      %p128 = por %p126, %p127
      %p129 = scmp.ne.s32.totalorder %s117, %s118
      %p130 = scmp.eq.s32.totalorder %s24, 1
      %p131 = por %p129, %p130
      %p133 = scmp.ne.s32.totalorder %s118, %s132
      %p134 = scmp.eq.s32.totalorder %s24, 0
      %p135 = por %p133, %p134
      %s137 = sadd.s32 %s136, 1
      %p140 = scmp.eq.s32.totalorder %s18, 1
      %p141 = scmp.ne.s32.totalorder %s136, %s138
      %p142 = scmp.eq.s32.totalorder %s18, 0
      %p143 = por %p141, %p142
      %p144 = scmp.ne.s32.totalorder %s136, %s138
      %p145 = scmp.eq.s32.totalorder %s23, 1
      %p146 = por %p144, %p145
      %p147 = scmp.ne.s32.totalorder %s138, %s139
      %p148 = scmp.eq.s32.totalorder %s23, 0
      %p149 = por %p147, %p148
      %p150 = scmp.ne.s32.totalorder %s138, %s139
      %p151 = scmp.eq.s32.totalorder %s24, 1
      %p152 = por %p150, %p151
      %p154 = scmp.ne.s32.totalorder %s139, %s153
      %p155 = scmp.eq.s32.totalorder %s24, 0
      %p156 = por %p154, %p155
      %s158 = sadd.s32 %s157, 1
      %p161 = scmp.eq.s32.totalorder %s18, 1
      %p162 = scmp.ne.s32.totalorder %s157, %s159
      %p163 = scmp.eq.s32.totalorder %s18, 0
      %p164 = por %p162, %p163
      %p165 = scmp.ne.s32.totalorder %s157, %s159
      %p166 = scmp.eq.s32.totalorder %s23, 1
      %p167 = por %p165, %p166
      %p168 = scmp.ne.s32.totalorder %s159, %s160
      %p169 = scmp.eq.s32.totalorder %s23, 0
      %p170 = por %p168, %p169
      %p171 = scmp.ne.s32.totalorder %s159, %s160
      %p172 = scmp.eq.s32.totalorder %s24, 1
      %p173 = por %p171, %p172
      %p175 = scmp.ne.s32.totalorder %s160, %s174
      %p176 = scmp.eq.s32.totalorder %s24, 0
      %p177 = por %p175, %p176
      %s178 = ssub.s32 %s18, %s25
      %p179 = scmp.eq.s32.totalorder %s178, 0
      %s181 = sadd.s32 %s180, 1
      %s182 = scalar_select %p179, %s180, %s181
      %p185 = pneg %p179
      %p186 = scmp.eq.s32.totalorder %s18, 1
      %p187 = por %p185, %p186
      %p188 = scmp.ne.s32.totalorder %s180, %s183
      %p189 = scmp.eq.s32.totalorder %s18, 0
      %p190 = por %p188, %p189
      %p191 = scmp.ne.s32.totalorder %s180, %s183
      %p192 = scmp.eq.s32.totalorder %s23, 1
      %p193 = por %p191, %p192
      %p194 = scmp.ne.s32.totalorder %s183, %s184
      %p195 = scmp.eq.s32.totalorder %s23, 0
      %p196 = por %p194, %p195
      %p197 = scmp.ne.s32.totalorder %s183, %s184
      %p198 = scmp.eq.s32.totalorder %s24, 1
      %p199 = por %p197, %p198
      %p201 = scmp.ne.s32.totalorder %s184, %s200
      %p202 = scmp.eq.s32.totalorder %s24, 0
      %p203 = por %p201, %p202
      %p204 = scmp.le.s32.totalorder 1, %s18
      %p205 = scmp.lt.s32.totalorder %s18, 3
      %p206 = pnand %p204, %p205
      %p207 = pneg %p206
      // Predicated region
      $region9: #{induction_head_forward.1} parent=5 // pred_check
        _
      $region10: #{induction_head_forward.1} parent=5 // pred_check_branch
        %209 = sbr.rel (%p206) target = $region12
      $region11: #{induction_head_forward.1} parent=5 // pred_region
        %s210 = ssub.s32 %s18, 1
        // Predicated region
        $region13: #{induction_head_forward.1} parent=11 // pred_check
          %p211 = pneg %p65
        $region14: #{induction_head_forward.1} parent=11 // pred_check_branch
          %213 = sbr.rel (%p211) target = $region16
        $region15: #{induction_head_forward.1} parent=11 // pred_region
          _
        $region16: #{induction_head_forward.1} parent=11 // pred_fallthru
          _
        // Predicated region
        $region17: #{induction_head_forward.1} parent=11 // pred_check
          %p214 = pneg %p86
        $region18: #{induction_head_forward.1} parent=11 // pred_check_branch
          %216 = sbr.rel (%p214) target = $region20
        $region19: #{induction_head_forward.1} parent=11 // pred_region
          %s218 = ssub.s32 16, 16
          %219 = vsyncadd [#allocation4], %s218
          %s221 = sshll.u32 %s2, 4
          %s222 = int_to_ptr.vmem [resolvable:$true] %s221
          %224 = dma.vmem_to_smem %s222, 16, [#allocation2], [#allocation4]
        $region20: #{induction_head_forward.1} parent=11 // pred_fallthru
          _
        // Predicated region
        $region21: #{induction_head_forward.1} parent=11 // pred_check
          %p225 = pneg %p107
        $region22: #{induction_head_forward.1} parent=11 // pred_check_branch
          %227 = sbr.rel (%p225) target = $region24
        $region23: #{induction_head_forward.1} parent=11 // pred_region
          _
        $region24: #{induction_head_forward.1} parent=11 // pred_fallthru
          _
        // Predicated region
        $region25: #{induction_head_forward.1} parent=11 // pred_check
          %p228 = pneg %p128
        $region26: #{induction_head_forward.1} parent=11 // pred_check_branch
          %230 = sbr.rel (%p228) target = $region28
        $region27: #{induction_head_forward.1} parent=11 // pred_region
          %s232 = ssub.s32 16, 16
          %233 = vsyncadd [#allocation6], %s232
          %s235 = sshll.u32 %s4, 4
          %s236 = int_to_ptr.vmem [resolvable:$true] %s235
          %238 = dma.vmem_to_smem %s236, 16, [#allocation5], [#allocation6]
        $region28: #{induction_head_forward.1} parent=11 // pred_fallthru
          _
        // Predicated region
        $region29: #{induction_head_forward.1} parent=11 // pred_check
          %p239 = pneg %p149
        $region30: #{induction_head_forward.1} parent=11 // pred_check_branch
          %241 = sbr.rel (%p239) target = $region32
        $region31: #{induction_head_forward.1} parent=11 // pred_region
          _
        $region32: #{induction_head_forward.1} parent=11 // pred_fallthru
          _
        // Predicated region
        $region33: #{induction_head_forward.1} parent=11 // pred_check
          %p242 = pneg %p170
        $region34: #{induction_head_forward.1} parent=11 // pred_check_branch
          %244 = sbr.rel (%p242) target = $region36
        $region35: #{induction_head_forward.1} parent=11 // pred_region
          _
        $region36: #{induction_head_forward.1} parent=11 // pred_fallthru
          _
      $region12: #{induction_head_forward.1} parent=5 // pred_fallthru
        _
      %p245 = scmp.lt.s32.totalorder %s18, 2
      // Predicated region
      $region37: #{induction_head_forward.1} parent=5 // pred_check
        %p246 = pneg %p245
      $region38: #{induction_head_forward.1} parent=5 // pred_check_branch
        %248 = sbr.rel (%p246) target = $region40
      $region39: #{induction_head_forward.1} parent=5 // pred_region
        // Predicated region
        $region41: #{induction_head_forward.1} parent=39 // pred_check
          %p249 = pneg %p38
        $region42: #{induction_head_forward.1} parent=39 // pred_check_branch
          %251 = sbr.rel (%p249) target = $region44
        $region43: #{induction_head_forward.1} parent=39 // pred_region
          %p252 = scmp.lt.s32.totalorder %s18, 1
          %s253 = scalar_select %p252, %s18, 1
          %s254 = smul.addr %s253, 8
          %s255 = scalar_lea.vmem %s0, %s254
        $region44: #{induction_head_forward.1} parent=39 // pred_fallthru
          _
      $region40: #{induction_head_forward.1} parent=5 // pred_fallthru
        _
      %p256 = scmp.le.s32.totalorder 1, %s18
      %p257 = scmp.lt.s32.totalorder %s18, 3
      %p258 = pnand %p256, %p257
      %p259 = pneg %p258
      // Predicated region
      $region45: #{induction_head_forward.1} parent=5 // pred_check
        _
      $region46: #{induction_head_forward.1} parent=5 // pred_check_branch
        %261 = sbr.rel (%p258) target = $region48
      $region47: #{induction_head_forward.1} parent=5 // pred_region
        %s262 = ssub.s32 %s18, 1
        // Predicated region
        $region49: #{induction_head_forward.1} parent=47 // pred_check
          %p263 = pneg %p86
        $region50: #{induction_head_forward.1} parent=47 // pred_check_branch
          %265 = sbr.rel (%p263) target = $region52
        $region51: #{induction_head_forward.1} parent=47 // pred_region
          %266 = dma.done [#allocation4], 16
        $region52: #{induction_head_forward.1} parent=47 // pred_fallthru
          _
        // Predicated region
        $region53: #{induction_head_forward.1} parent=47 // pred_check
          %p267 = pneg %p128
        $region54: #{induction_head_forward.1} parent=47 // pred_check_branch
          %269 = sbr.rel (%p267) target = $region56
        $region55: #{induction_head_forward.1} parent=47 // pred_region
          %270 = dma.done [#allocation6], 16
        $region56: #{induction_head_forward.1} parent=47 // pred_fallthru
          _
        %271 = sfence
        %p272 = scmp.lt.s32.totalorder %s23, 1
        %s273 = scalar_select %p272, %s23, 1
        %s274 = smul.addr %s273, 8
        %s275 = scalar_lea.vmem %s0, %s274
        %p276 = pneg %p44
        %p277 = pneg %p41
        %p278 = pneg %p65
        %p279 = pneg %p62
        %p280 = pneg %p86
        %p281 = pneg %p83
        %p282 = pneg %p107
        %p283 = pneg %p104
        %p284 = pneg %p128
        %p285 = pneg %p125
        %p286 = pneg %p149
        %p287 = pneg %p146
        %p288 = pneg %p170
        %p289 = pneg %p167
        %p290 = pneg %p196
        %p291 = pneg %p193
        %s292 = sand.u32 %s183, 1
        %s293 = scalar_lea.sflag [#allocation3], %s292
        %s294 = sand.u32 %s183, 1
        %s295 = smul.addr %s294, 8
        %s296 = scalar_lea.vmem [#allocation7], %s295
        %p297 = scmp.lt.s32.totalorder %s23, 1
        %s298 = scalar_select %p297, %s23, 1
        %s299 = smul.addr %s298, 8
        %s300 = scalar_lea.vmem %s0, %s299
        %v302 = vlaneseq
        %v303 = vshrl.u32 %v302, 7
        %v304 = vlaneseq
        %v305 = vand.u32 %v304, 127
        %vm306 = vcmp.gt.s32.totalorder %v305, %v303
        %vm307 = vcmp.ge.s32.totalorder %v305, %v303
        %v308 = vsub.s32 %v303, %v305
        %vm309 = vcmp.ge.s32.totalorder %v308, 4
        %vm310 = vmor %vm307, %vm309
        %v311 = vsub.s32 %v308, 1
        %vm312 = vcmp.gt.s32.totalorder %v311, 0
        %v313 = vsel %vm312, %v311, 0
        %vm314 = vcmp.lt.s32.totalorder %v313, 3
        %v315 = vsel %vm314, %v313, 3
        %v316 = vld [vmem:[%s300] sm:$0xff]
        %v317 = vpack.c.bf16 %v316, %v316
        %v318 = vld [vmem:[%s1] sm:$0xff]
        %v319 = vld [vmem:[%s1 + $0x8] sm:$0xff]
        %v320 = vld [vmem:[%s1 + $0x10] sm:$0xff]
        %v321 = vld [vmem:[%s1 + $0x18] sm:$0xff]
        %v326 = vunpack.c.l.b16 %v318
        %v327 = vunpack.c.h.b16 %v318
        %v328 = vunpack.c.l.b16 %v319
        %v329 = vunpack.c.h.b16 %v319
        %v330 = vunpack.c.l.b16 %v320
        %v331 = vunpack.c.h.b16 %v320
        %v332 = vunpack.c.l.b16 %v321
        %v333 = vunpack.c.h.b16 %v321
        %v334 = vpack.c.b16 %v328, %v326
        %v335 = vpack.c.b16 %v329, %v327
        %v336 = vpack.c.b16 %v332, %v330
        %v337 = vpack.c.b16 %v333, %v331
        %vm342 = vcmask 261120
        %v344 = vsel %vm342, %v317, 0
        %346 = vmatprep.subr.bf16.mxu0 %v335
        %347 = vmatpush1.bf16.msra.mxu0 %v334
        %348 = vmatprep.subr.bf16.mxu0 %v337
        %349 = vmatpush1.bf16.msra.mxu0 %v336
        %350 = vmatprep.subr.bf16.mxu0 0
        %351 = vmatpush1.bf16.msra.mxu0 0
        %352 = vmatprep.subr.bf16.mxu0 0
        %353 = vmatpush1.bf16.msra.mxu0 0
        %354 = vmatprep.subr.bf16.mxu0 0
        %355 = vmatpush1.bf16.msra.mxu0 0
        %356 = vmatprep.subr.bf16.mxu0 0
        %357 = vmatpush1.bf16.msra.mxu0 0
        %358 = vmatprep.subr.bf16.mxu0 0
        %359 = vmatpush1.bf16.msra.mxu0 0
        %360 = vmatprep.subr.bf16.mxu0 0
        %361 = vmatpush1.bf16.msra.mxu0 0
        %362 = vmatprep.subr.bf16.mxu0 0
        %363 = vmatpush1.bf16.msra.mxu0 0
        %364 = vmatprep.subr.bf16.mxu0 0
        %365 = vmatpush1.bf16.msra.mxu0 0
        %366 = vmatprep.subr.bf16.mxu0 0
        %367 = vmatpush1.bf16.msra.mxu0 0
        %368 = vmatprep.subr.bf16.mxu0 0
        %369 = vmatpush1.bf16.msra.mxu0 0
        %370 = vmatprep.subr.bf16.mxu0 0
        %371 = vmatpush1.bf16.msra.mxu0 0
        %372 = vmatprep.subr.bf16.mxu0 0
        %373 = vmatpush1.bf16.msra.mxu0 0
        %374 = vmatprep.subr.bf16.mxu0 0
        %375 = vmatpush1.bf16.msra.mxu0 0
        %376 = vmatprep.subr.bf16.mxu0 0
        %377 = vmatpush1.bf16.msra.mxu0 0
        %378 = vmatprep.mubr.bf16.mxu0 0
        %379 = vmatmul.mubr.bf16.gmra.mrb[0].mxu0 %v344
        %v380 = vpop.f32.mrb[0].mxu0
        %v381 = vadd.f32 0.0, %v380
        %v382 = vpop.f32.mrb[0].mxu0
        %v383 = vadd.f32 0.0, %v382
        %v384 = vpop.f32.mrb[0].mxu0
        %v385 = vpop.f32.mrb[0].mxu0
        %386 = vdwg.mxu0
        %vm387 = vcmp.eq.s32.totalorder %v315, 0
        %s388 = sld [smem:[#allocation2]]
        %v389 = vstv %s388
        %v390 = vsel %vm387, %v389, 0.0
        %vm391 = vcmp.eq.s32.totalorder %v315, 1
        %s392 = sld [smem:[#allocation2 + $0x1]]
        %v393 = vstv %s392
        %v394 = vsel %vm391, %v393, %v390
        %vm395 = vcmp.eq.s32.totalorder %v315, 2
        %s396 = sld [smem:[#allocation2 + $0x2]]
        %v397 = vstv %s396
        %v398 = vsel %vm395, %v397, %v394
        %vm399 = vcmp.eq.s32.totalorder %v315, 3
        %s400 = sld [smem:[#allocation2 + $0x3]]
        %v401 = vstv %s400
        %v402 = vsel %vm399, %v401, %v398
        %v403 = vsel %vm310, -1e+09, %v402
        %v404 = vpack.c.bf16 %v381, %v381
        %v405 = vpack.c.bf16 %v383, %v383
        %407 = vrot.lane.b32.xlu0 %v404, 64
        %v408 = vpop.permute.xlu0 %407
        %v410 = vsel %vm342, %v404, 0
        %v413 = vsel %vm342, %v408, 0
        %415 = vmatprep.subr.bf16.mxu0 0
        %416 = vmatpush1.bf16.xpose.msra.mxu0 %v413
        %417 = vmatprep.subr.bf16.mxu0 0
        %418 = vmatpush1.bf16.xpose.msra.mxu0 0
        %419 = vmatprep.subr.bf16.mxu0 0
        %420 = vmatpush1.bf16.xpose.msra.mxu0 0
        %421 = vmatprep.subr.bf16.mxu0 0
        %422 = vmatpush1.bf16.xpose.msra.mxu0 0
        %423 = vmatprep.subr.bf16.mxu0 0
        %424 = vmatpush1.bf16.xpose.msra.mxu0 0
        %425 = vmatprep.subr.bf16.mxu0 0
        %426 = vmatpush1.bf16.xpose.msra.mxu0 0
        %427 = vmatprep.subr.bf16.mxu0 0
        %428 = vmatpush1.bf16.xpose.msra.mxu0 0
        %429 = vmatprep.subr.bf16.mxu0 0
        %430 = vmatpush1.bf16.xpose.msra.mxu0 0
        %431 = vmatprep.subr.bf16.mxu0 0
        %432 = vmatpush1.bf16.xpose.msra.mxu0 0
        %433 = vmatprep.subr.bf16.mxu0 0
        %434 = vmatpush1.bf16.xpose.msra.mxu0 0
        %435 = vmatprep.subr.bf16.mxu0 0
        %436 = vmatpush1.bf16.xpose.msra.mxu0 0
        %437 = vmatprep.subr.bf16.mxu0 0
        %438 = vmatpush1.bf16.xpose.msra.mxu0 0
        %439 = vmatprep.subr.bf16.mxu0 0
        %440 = vmatpush1.bf16.xpose.msra.mxu0 0
        %441 = vmatprep.subr.bf16.mxu0 0
        %442 = vmatpush1.bf16.xpose.msra.mxu0 0
        %443 = vmatprep.subr.bf16.mxu0 0
        %444 = vmatpush1.bf16.xpose.msra.mxu0 0
        %445 = vmatprep.subr.bf16.mxu0 0
        %446 = vmatpush1.bf16.xpose.msra.mxu0 0
        %447 = vmatprep.mubr.bf16.mxu0 0
        %448 = vmatmul.mubr.bf16.gmra.mrb[0].mxu0 %v410
        %v449 = vpop.f32.mrb[0].mxu0
        %v450 = vadd.f32 0.0, %v449
        %v451 = vpop.f32.mrb[0].mxu0
        %v452 = vpop.f32.mrb[0].mxu0
        %v453 = vpop.f32.mrb[0].mxu0
        %454 = vdwg.mxu0
        %v455 = vmul.f32 %v450, 0.17677669
        %v456 = vsel %vm306, -1e+09, %v455
        %v457 = vadd.f32 %v456, %v403
        %vm458 = vcmask 64512
        %v459 = vsel %vm458, %v457, -inf
        %460 = vmax.xlane.f32.xlu0 %v459
        %v461 = vpop.xlane.xlu0 %460
        %v462 = vsub.f32 %v457, %v461
        %v463 = vmul.f32 %v462, 1.442695
        %v464 = vpow.pop %v463
        %v465 = vsel %vm458, %v464, 0.0
        %466 = vadd.xlane.f32.xlu0 %v465
        %v467 = vpop.xlane.xlu0 %466
        %v468 = vrcp.pop %v467
        %v469 = vmul.f32 %v464, %v468
        %v470 = vpack.c.bf16 %v469, %v469
        %v472 = vsel %vm458, %v470, 0
        %vm474 = vcmask 1043456
        %v476 = vsel %vm474, %v405, 0
        %478 = vmatprep.subr.bf16.mxu0 0
        %479 = vmatpush1.bf16.msra.mxu0 %v476
        %480 = vmatprep.subr.bf16.mxu0 0
        %481 = vmatpush1.bf16.msra.mxu0 0
        %482 = vmatprep.subr.bf16.mxu0 0
        %483 = vmatpush1.bf16.msra.mxu0 0
        %484 = vmatprep.subr.bf16.mxu0 0
        %485 = vmatpush1.bf16.msra.mxu0 0
        %486 = vmatprep.subr.bf16.mxu0 0
        %487 = vmatpush1.bf16.msra.mxu0 0
        %488 = vmatprep.subr.bf16.mxu0 0
        %489 = vmatpush1.bf16.msra.mxu0 0
        %490 = vmatprep.subr.bf16.mxu0 0
        %491 = vmatpush1.bf16.msra.mxu0 0
        %492 = vmatprep.subr.bf16.mxu0 0
        %493 = vmatpush1.bf16.msra.mxu0 0
        %494 = vmatprep.subr.bf16.mxu0 0
        %495 = vmatpush1.bf16.msra.mxu0 0
        %496 = vmatprep.subr.bf16.mxu0 0
        %497 = vmatpush1.bf16.msra.mxu0 0
        %498 = vmatprep.subr.bf16.mxu0 0
        %499 = vmatpush1.bf16.msra.mxu0 0
        %500 = vmatprep.subr.bf16.mxu0 0
        %501 = vmatpush1.bf16.msra.mxu0 0
        %502 = vmatprep.subr.bf16.mxu0 0
        %503 = vmatpush1.bf16.msra.mxu0 0
        %504 = vmatprep.subr.bf16.mxu0 0
        %505 = vmatpush1.bf16.msra.mxu0 0
        %506 = vmatprep.subr.bf16.mxu0 0
        %507 = vmatpush1.bf16.msra.mxu0 0
        %508 = vmatprep.subr.bf16.mxu0 0
        %509 = vmatpush1.bf16.msra.mxu0 0
        %510 = vmatprep.mubr.bf16.mxu0 0
        %511 = vmatmul.mubr.bf16.gmra.mrb[0].mxu0 %v472
        %v512 = vpop.f32.mrb[0].mxu0
        %v513 = vadd.f32 0.0, %v512
        %v514 = vpop.f32.mrb[0].mxu0
        %v515 = vpop.f32.mrb[0].mxu0
        %v516 = vpop.f32.mrb[0].mxu0
        %517 = vdwg.mxu0
        %518 = vrot.lane.b32.xlu0 %v404, 96
        %v519 = vpop.permute.xlu0 %518
        %520 = vrot.lane.b32.xlu0 %v404, 32
        %v521 = vpop.permute.xlu0 %520
        %v523 = vsel %vm342, %v519, 0
        %v526 = vsel %vm342, %v521, 0
        %528 = vmatprep.subr.bf16.mxu0 0
        %529 = vmatpush1.bf16.xpose.msra.mxu0 %v526
        %530 = vmatprep.subr.bf16.mxu0 0
        %531 = vmatpush1.bf16.xpose.msra.mxu0 0
        %532 = vmatprep.subr.bf16.mxu0 0
        %533 = vmatpush1.bf16.xpose.msra.mxu0 0
        %534 = vmatprep.subr.bf16.mxu0 0
        %535 = vmatpush1.bf16.xpose.msra.mxu0 0
        %536 = vmatprep.subr.bf16.mxu0 0
        %537 = vmatpush1.bf16.xpose.msra.mxu0 0
        %538 = vmatprep.subr.bf16.mxu0 0
        %539 = vmatpush1.bf16.xpose.msra.mxu0 0
        %540 = vmatprep.subr.bf16.mxu0 0
        %541 = vmatpush1.bf16.xpose.msra.mxu0 0
        %542 = vmatprep.subr.bf16.mxu0 0
        %543 = vmatpush1.bf16.xpose.msra.mxu0 0
        %544 = vmatprep.subr.bf16.mxu0 0
        %545 = vmatpush1.bf16.xpose.msra.mxu0 0
        %546 = vmatprep.subr.bf16.mxu0 0
        %547 = vmatpush1.bf16.xpose.msra.mxu0 0
        %548 = vmatprep.subr.bf16.mxu0 0
        %549 = vmatpush1.bf16.xpose.msra.mxu0 0
        %550 = vmatprep.subr.bf16.mxu0 0
        %551 = vmatpush1.bf16.xpose.msra.mxu0 0
        %552 = vmatprep.subr.bf16.mxu0 0
        %553 = vmatpush1.bf16.xpose.msra.mxu0 0
        %554 = vmatprep.subr.bf16.mxu0 0
        %555 = vmatpush1.bf16.xpose.msra.mxu0 0
        %556 = vmatprep.subr.bf16.mxu0 0
        %557 = vmatpush1.bf16.xpose.msra.mxu0 0
        %558 = vmatprep.subr.bf16.mxu0 0
        %559 = vmatpush1.bf16.xpose.msra.mxu0 0
        %560 = vmatprep.mubr.bf16.mxu0 0
        %561 = vmatmul.mubr.bf16.gmra.mrb[0].mxu0 %v523
        %v562 = vpop.f32.mrb[0].mxu0
        %v563 = vadd.f32 0.0, %v562
        %v564 = vpop.f32.mrb[0].mxu0
        %v565 = vpop.f32.mrb[0].mxu0
        %v566 = vpop.f32.mrb[0].mxu0
        %567 = vdwg.mxu0
        %v568 = vmul.f32 %v563, 0.17677669
        %v569 = vsel %vm306, -1e+09, %v568
        %v570 = vadd.f32 %v569, %v403
        %v571 = vsel %vm458, %v570, -inf
        %572 = vmax.xlane.f32.xlu0 %v571
        %v573 = vpop.xlane.xlu0 %572
        %v574 = vsub.f32 %v570, %v573
        %v575 = vmul.f32 %v574, 1.442695
        %v576 = vpow.pop %v575
        %v577 = vsel %vm458, %v576, 0.0
        %578 = vadd.xlane.f32.xlu0 %v577
        %v579 = vpop.xlane.xlu0 %578
        %v580 = vrcp.pop %v579
        %v581 = vmul.f32 %v576, %v580
        %v582 = vpack.c.bf16 %v581, %v581
        %584 = vrot.lane.b32.xlu0 %v405, 96
        %v585 = vpop.permute.xlu0 %584
        %v587 = vsel %vm458, %v582, 0
        %v590 = vsel %vm474, %v585, 0
        %592 = vmatprep.subr.bf16.mxu0 0
        %593 = vmatpush1.bf16.msra.mxu0 %v590
        %594 = vmatprep.subr.bf16.mxu0 0
        %595 = vmatpush1.bf16.msra.mxu0 0
        %596 = vmatprep.subr.bf16.mxu0 0
        %597 = vmatpush1.bf16.msra.mxu0 0
        %598 = vmatprep.subr.bf16.mxu0 0
        %599 = vmatpush1.bf16.msra.mxu0 0
        %600 = vmatprep.subr.bf16.mxu0 0
        %601 = vmatpush1.bf16.msra.mxu0 0
        %602 = vmatprep.subr.bf16.mxu0 0
        %603 = vmatpush1.bf16.msra.mxu0 0
        %604 = vmatprep.subr.bf16.mxu0 0
        %605 = vmatpush1.bf16.msra.mxu0 0
        %606 = vmatprep.subr.bf16.mxu0 0
        %607 = vmatpush1.bf16.msra.mxu0 0
        %608 = vmatprep.subr.bf16.mxu0 0
        %609 = vmatpush1.bf16.msra.mxu0 0
        %610 = vmatprep.subr.bf16.mxu0 0
        %611 = vmatpush1.bf16.msra.mxu0 0
        %612 = vmatprep.subr.bf16.mxu0 0
        %613 = vmatpush1.bf16.msra.mxu0 0
        %614 = vmatprep.subr.bf16.mxu0 0
        %615 = vmatpush1.bf16.msra.mxu0 0
        %616 = vmatprep.subr.bf16.mxu0 0
        %617 = vmatpush1.bf16.msra.mxu0 0
        %618 = vmatprep.subr.bf16.mxu0 0
        %619 = vmatpush1.bf16.msra.mxu0 0
        %620 = vmatprep.subr.bf16.mxu0 0
        %621 = vmatpush1.bf16.msra.mxu0 0
        %622 = vmatprep.subr.bf16.mxu0 0
        %623 = vmatpush1.bf16.msra.mxu0 0
        %624 = vmatprep.mubr.bf16.mxu0 0
        %625 = vmatmul.mubr.bf16.gmra.mrb[0].mxu0 %v587
        %v626 = vpop.f32.mrb[0].mxu0
        %v627 = vadd.f32 0.0, %v626
        %v628 = vpop.f32.mrb[0].mxu0
        %v629 = vpop.f32.mrb[0].mxu0
        %v630 = vpop.f32.mrb[0].mxu0
        %631 = vdwg.mxu0
        %633 = vrot.lane.b32.xlu0 %v513, 32
        %v634 = vpop.permute.xlu0 %633
        %637 = vrot.lane.b32.xlu0 %v627, 64
        %v638 = vpop.permute.xlu0 %637
        %v640 = vsel %vm342, %v316, %v634
        %vm641 = vcmask 523264
        %v642 = vsel %vm641, %v640, %v638
        %v643 = vpack.c.bf16 %v642, %v642
        %v644 = vld [vmem:[%s3] sm:$0xff]
        %v645 = vld [vmem:[%s3 + $0x8] sm:$0xff]
        %v646 = vld [vmem:[%s3 + $0x10] sm:$0xf]
        %v647 = vld [vmem:[%s3 + $0x14] sm:$0xff]
        %v648 = vld [vmem:[%s3 + $0x1c] sm:$0xff]
        %v649 = vld [vmem:[%s3 + $0x24] sm:$0xf]
        %v650 = vld [vmem:[%s3 + $0x28] sm:$0xff]
        %v651 = vld [vmem:[%s3 + $0x30] sm:$0xff]
        %v652 = vld [vmem:[%s3 + $0x38] sm:$0xf]
        %v653 = vld [vmem:[%s3 + $0x3c] sm:$0xff]
        %v654 = vld [vmem:[%s3 + $0x44] sm:$0xff]
        %v655 = vld [vmem:[%s3 + $0x4c] sm:$0xf]
        %v656 = vld [vmem:[%s3 + $0x50] sm:$0xff]
        %v657 = vld [vmem:[%s3 + $0x58] sm:$0xff]
        %v658 = vld [vmem:[%s3 + $0x60] sm:$0xf]
        %v659 = vld [vmem:[%s3 + $0x64] sm:$0xff]
        %v660 = vld [vmem:[%s3 + $0x6c] sm:$0xff]
        %v661 = vld [vmem:[%s3 + $0x74] sm:$0xf]
        %v662 = vld [vmem:[%s3 + $0x78] sm:$0xff]
        %v663 = vld [vmem:[%s3 + $0x80] sm:$0xff]
        %v664 = vld [vmem:[%s3 + $0x88] sm:$0xf]
        %v665 = vld [vmem:[%s3 + $0x8c] sm:$0xff]
        %v666 = vld [vmem:[%s3 + $0x94] sm:$0xff]
        %v667 = vld [vmem:[%s3 + $0x9c] sm:$0xf]
        %v668 = vld [vmem:[%s3 + $0xa0] sm:$0xff]
        %v669 = vld [vmem:[%s3 + $0xa8] sm:$0xff]
        %v670 = vld [vmem:[%s3 + $0xb0] sm:$0xf]
        %v671 = vld [vmem:[%s3 + $0xb4] sm:$0xff]
        %v672 = vld [vmem:[%s3 + $0xbc] sm:$0xff]
        %v673 = vld [vmem:[%s3 + $0xc4] sm:$0xf]
        %v674 = vld [vmem:[%s3 + $0xc8] sm:$0xff]
        %v675 = vld [vmem:[%s3 + $0xd0] sm:$0xff]
        %v676 = vld [vmem:[%s3 + $0xd8] sm:$0xf]
        %v677 = vld [vmem:[%s3 + $0xdc] sm:$0xff]
        %v678 = vld [vmem:[%s3 + $0xe4] sm:$0xff]
        %v679 = vld [vmem:[%s3 + $0xec] sm:$0xf]
        %v716 = vunpack.c.l.b16 %v644
        %v717 = vunpack.c.h.b16 %v644
        %v718 = vunpack.c.l.b16 %v645
        %v719 = vunpack.c.h.b16 %v645
        %v720 = vunpack.c.l.b16 %v646
        %v721 = vunpack.c.l.b16 %v647
        %v722 = vunpack.c.h.b16 %v647
        %v723 = vunpack.c.l.b16 %v648
        %v724 = vunpack.c.h.b16 %v648
        %v725 = vunpack.c.l.b16 %v649
        %v726 = vunpack.c.l.b16 %v650
        %v727 = vunpack.c.h.b16 %v650
        %v728 = vunpack.c.l.b16 %v651
        %v729 = vunpack.c.h.b16 %v651
        %v730 = vunpack.c.l.b16 %v652
        %v731 = vunpack.c.l.b16 %v653
        %v732 = vunpack.c.h.b16 %v653
        %v733 = vunpack.c.l.b16 %v654
        %v734 = vunpack.c.h.b16 %v654
        %v735 = vunpack.c.l.b16 %v655
        %v736 = vunpack.c.l.b16 %v656
        %v737 = vunpack.c.h.b16 %v656
        %v738 = vunpack.c.l.b16 %v657
        %v739 = vunpack.c.h.b16 %v657
        %v740 = vunpack.c.l.b16 %v658
        %v741 = vunpack.c.l.b16 %v659
        %v742 = vunpack.c.h.b16 %v659
        %v743 = vunpack.c.l.b16 %v660
        %v744 = vunpack.c.h.b16 %v660
        %v745 = vunpack.c.l.b16 %v661
        %v746 = vunpack.c.l.b16 %v662
        %v747 = vunpack.c.h.b16 %v662
        %v748 = vunpack.c.l.b16 %v663
        %v749 = vunpack.c.h.b16 %v663
        %v750 = vunpack.c.l.b16 %v664
        %v751 = vunpack.c.l.b16 %v665
        %v752 = vunpack.c.h.b16 %v665
        %v753 = vunpack.c.l.b16 %v666
        %v754 = vunpack.c.h.b16 %v666
        %v755 = vunpack.c.l.b16 %v667
        %v756 = vunpack.c.l.b16 %v668
        %v757 = vunpack.c.h.b16 %v668
        %v758 = vunpack.c.l.b16 %v669
        %v759 = vunpack.c.h.b16 %v669
        %v760 = vunpack.c.l.b16 %v670
        %v761 = vunpack.c.l.b16 %v671
        %v762 = vunpack.c.h.b16 %v671
        %v763 = vunpack.c.l.b16 %v672
        %v764 = vunpack.c.h.b16 %v672
        %v765 = vunpack.c.l.b16 %v673
        %v766 = vunpack.c.l.b16 %v674
        %v767 = vunpack.c.h.b16 %v674
        %v768 = vunpack.c.l.b16 %v675
        %v769 = vunpack.c.h.b16 %v675
        %v770 = vunpack.c.l.b16 %v676
        %v771 = vunpack.c.l.b16 %v677
        %v772 = vunpack.c.h.b16 %v677
        %v773 = vunpack.c.l.b16 %v678
        %v774 = vunpack.c.h.b16 %v678
        %v775 = vunpack.c.l.b16 %v679
        %v776 = vpack.c.b16 %v721, %v716
        %v777 = vpack.c.b16 %v722, %v717
        %v778 = vpack.c.b16 %v723, %v718
        %v779 = vpack.c.b16 %v724, %v719
        %v780 = vpack.c.b16 %v725, %v720
        %v781 = vpack.c.b16 %v731, %v726
        %v782 = vpack.c.b16 %v732, %v727
        %v783 = vpack.c.b16 %v733, %v728
        %v784 = vpack.c.b16 %v734, %v729
        %v785 = vpack.c.b16 %v735, %v730
        %v786 = vpack.c.b16 %v741, %v736
        %v787 = vpack.c.b16 %v742, %v737
        %v788 = vpack.c.b16 %v743, %v738
        %v789 = vpack.c.b16 %v744, %v739
        %v790 = vpack.c.b16 %v745, %v740
        %v791 = vpack.c.b16 %v751, %v746
        %v792 = vpack.c.b16 %v752, %v747
        %v793 = vpack.c.b16 %v753, %v748
        %v794 = vpack.c.b16 %v754, %v749
        %v795 = vpack.c.b16 %v755, %v750
        %v796 = vpack.c.b16 %v761, %v756
        %v797 = vpack.c.b16 %v762, %v757
        %v798 = vpack.c.b16 %v763, %v758
        %v799 = vpack.c.b16 %v764, %v759
        %v800 = vpack.c.b16 %v765, %v760
        %v801 = vpack.c.b16 %v771, %v766
        %v802 = vpack.c.b16 %v772, %v767
        %v803 = vpack.c.b16 %v773, %v768
        %v804 = vpack.c.b16 %v774, %v769
        %v805 = vpack.c.b16 %v775, %v770
        %vm836 = vcmask 785408
        %v838 = vsel %vm836, %v643, 0
        %840 = vmatprep.subr.bf16.mxu0 %v777
        %841 = vmatpush1.bf16.msra.mxu0 %v776
        %842 = vmatprep.subr.bf16.mxu0 %v782
        %843 = vmatpush1.bf16.msra.mxu0 %v781
        %844 = vmatprep.subr.bf16.mxu0 %v787
        %845 = vmatpush1.bf16.msra.mxu0 %v786
        %846 = vmatprep.subr.bf16.mxu0 %v792
        %847 = vmatpush1.bf16.msra.mxu0 %v791
        %848 = vmatprep.subr.bf16.mxu0 %v797
        %849 = vmatpush1.bf16.msra.mxu0 %v796
        %850 = vmatprep.subr.bf16.mxu0 %v802
        %851 = vmatpush1.bf16.msra.mxu0 %v801
        %852 = vmatprep.subr.bf16.mxu0 0
        %853 = vmatpush1.bf16.msra.mxu0 0
        %854 = vmatprep.subr.bf16.mxu0 0
        %855 = vmatpush1.bf16.msra.mxu0 0
        %856 = vmatprep.subr.bf16.mxu0 0
        %857 = vmatpush1.bf16.msra.mxu0 0
        %858 = vmatprep.subr.bf16.mxu0 0
        %859 = vmatpush1.bf16.msra.mxu0 0
        %860 = vmatprep.subr.bf16.mxu0 0
        %861 = vmatpush1.bf16.msra.mxu0 0
        %862 = vmatprep.subr.bf16.mxu0 0
        %863 = vmatpush1.bf16.msra.mxu0 0
        %864 = vmatprep.subr.bf16.mxu0 0
        %865 = vmatpush1.bf16.msra.mxu0 0
        %866 = vmatprep.subr.bf16.mxu0 0
        %867 = vmatpush1.bf16.msra.mxu0 0
        %868 = vmatprep.subr.bf16.mxu0 0
        %869 = vmatpush1.bf16.msra.mxu0 0
        %870 = vmatprep.subr.bf16.mxu0 0
        %871 = vmatpush1.bf16.msra.mxu0 0
        %872 = vmatprep.mubr.bf16.mxu0 0
        %873 = vmatmul.mubr.bf16.gmra.mrb[0].mxu0 %v838
        %v874 = vpop.f32.mrb[0].mxu0
        %v875 = vadd.f32 0.0, %v874
        %v876 = vpop.f32.mrb[0].mxu0
        %v877 = vadd.f32 0.0, %v876
        %v878 = vpop.f32.mrb[0].mxu0
        %v879 = vpop.f32.mrb[0].mxu0
        %880 = vdwg.mxu0
        %881 = vmatprep.subr.bf16.mxu0 %v779
        %882 = vmatpush1.bf16.msra.mxu0 %v778
        %883 = vmatprep.subr.bf16.mxu0 %v784
        %884 = vmatpush1.bf16.msra.mxu0 %v783
        %885 = vmatprep.subr.bf16.mxu0 %v789
        %886 = vmatpush1.bf16.msra.mxu0 %v788
        %887 = vmatprep.subr.bf16.mxu0 %v794
        %888 = vmatpush1.bf16.msra.mxu0 %v793
        %889 = vmatprep.subr.bf16.mxu0 %v799
        %890 = vmatpush1.bf16.msra.mxu0 %v798
        %891 = vmatprep.subr.bf16.mxu0 %v804
        %892 = vmatpush1.bf16.msra.mxu0 %v803
        %893 = vmatprep.subr.bf16.mxu0 0
        %894 = vmatpush1.bf16.msra.mxu0 0
        %895 = vmatprep.subr.bf16.mxu0 0
        %896 = vmatpush1.bf16.msra.mxu0 0
        %897 = vmatprep.subr.bf16.mxu0 0
        %898 = vmatpush1.bf16.msra.mxu0 0
        %899 = vmatprep.subr.bf16.mxu0 0
        %900 = vmatpush1.bf16.msra.mxu0 0
        %901 = vmatprep.subr.bf16.mxu0 0
        %902 = vmatpush1.bf16.msra.mxu0 0
        %903 = vmatprep.subr.bf16.mxu0 0
        %904 = vmatpush1.bf16.msra.mxu0 0
        %905 = vmatprep.subr.bf16.mxu0 0
        %906 = vmatpush1.bf16.msra.mxu0 0
        %907 = vmatprep.subr.bf16.mxu0 0
        %908 = vmatpush1.bf16.msra.mxu0 0
        %909 = vmatprep.subr.bf16.mxu0 0
        %910 = vmatpush1.bf16.msra.mxu0 0
        %911 = vmatprep.subr.bf16.mxu0 0
        %912 = vmatpush1.bf16.msra.mxu0 0
        %913 = vmatprep.mubr.bf16.mxu0 0
        %914 = vmatmul.mubr.bf16.gmra.mrb[0].mxu0 %v838
        %v915 = vpop.f32.mrb[0].mxu0
        %v916 = vadd.f32 0.0, %v915
        %v917 = vpop.f32.mrb[0].mxu0
        %v918 = vadd.f32 0.0, %v917
        %v919 = vpop.f32.mrb[0].mxu0
        %v920 = vpop.f32.mrb[0].mxu0
        %921 = vdwg.mxu0
        %922 = vmatprep.subr.bf16.mxu0 0
        %923 = vmatpush1.bf16.msra.mxu0 %v780
        %924 = vmatprep.subr.bf16.mxu0 0
        %925 = vmatpush1.bf16.msra.mxu0 %v785
        %926 = vmatprep.subr.bf16.mxu0 0
        %927 = vmatpush1.bf16.msra.mxu0 %v790
        %928 = vmatprep.subr.bf16.mxu0 0
        %929 = vmatpush1.bf16.msra.mxu0 %v795
        %930 = vmatprep.subr.bf16.mxu0 0
        %931 = vmatpush1.bf16.msra.mxu0 %v800
        %932 = vmatprep.subr.bf16.mxu0 0
        %933 = vmatpush1.bf16.msra.mxu0 %v805
        %934 = vmatprep.subr.bf16.mxu0 0
        %935 = vmatpush1.bf16.msra.mxu0 0
        %936 = vmatprep.subr.bf16.mxu0 0
        %937 = vmatpush1.bf16.msra.mxu0 0
        %938 = vmatprep.subr.bf16.mxu0 0
        %939 = vmatpush1.bf16.msra.mxu0 0
        %940 = vmatprep.subr.bf16.mxu0 0
        %941 = vmatpush1.bf16.msra.mxu0 0
        %942 = vmatprep.subr.bf16.mxu0 0
        %943 = vmatpush1.bf16.msra.mxu0 0
        %944 = vmatprep.subr.bf16.mxu0 0
        %945 = vmatpush1.bf16.msra.mxu0 0
        %946 = vmatprep.subr.bf16.mxu0 0
        %947 = vmatpush1.bf16.msra.mxu0 0
        %948 = vmatprep.subr.bf16.mxu0 0
        %949 = vmatpush1.bf16.msra.mxu0 0
        %950 = vmatprep.subr.bf16.mxu0 0
        %951 = vmatpush1.bf16.msra.mxu0 0
        %952 = vmatprep.subr.bf16.mxu0 0
        %953 = vmatpush1.bf16.msra.mxu0 0
        %954 = vmatprep.mubr.bf16.mxu0 0
        %955 = vmatmul.mubr.bf16.gmra.mrb[0].mxu0 %v838
        %v956 = vpop.f32.mrb[0].mxu0
        %v957 = vadd.f32 0.0, %v956
        %v958 = vpop.f32.mrb[0].mxu0
        %v959 = vpop.f32.mrb[0].mxu0
        %v960 = vpop.f32.mrb[0].mxu0
        %961 = vdwg.mxu0
        %s962 = sld [smem:[#allocation5]]
        %v963 = vstv %s962
        %v964 = vsel %vm387, %v963, 0.0
        %s965 = sld [smem:[#allocation5 + $0x1]]
        %v966 = vstv %s965
        %v967 = vsel %vm391, %v966, %v964
        %s968 = sld [smem:[#allocation5 + $0x2]]
        %v969 = vstv %s968
        %v970 = vsel %vm395, %v969, %v967
        %s971 = sld [smem:[#allocation5 + $0x3]]
        %v972 = vstv %s971
        %v973 = vsel %vm399, %v972, %v970
        %v974 = vsel %vm310, -1e+09, %v973
        %v975 = vpack.c.bf16 %v875, %v875
        %v976 = vpack.c.bf16 %v877, %v877
        %v977 = vpack.c.bf16 %v916, %v916
        %v978 = vpack.c.bf16 %v918, %v918
        %981 = vrot.lane.b32.xlu0 %v976, 64
        %v982 = vpop.permute.xlu0 %981
        %983 = vrot.lane.b32.xlu0 %v977, 64
        %v984 = vpop.permute.xlu0 %983
        %vm985 = vcmask 523264
        %v986 = vsel %vm985, %v982, %v984
        %v988 = vsel %vm836, %v975, 0
        %v991 = vsel %vm836, %v986, 0
        %993 = vmatprep.subr.bf16.mxu0 0
        %994 = vmatpush1.bf16.xpose.msra.mxu0 %v991
        %995 = vmatprep.subr.bf16.mxu0 0
        %996 = vmatpush1.bf16.xpose.msra.mxu0 0
        %997 = vmatprep.subr.bf16.mxu0 0
        %998 = vmatpush1.bf16.xpose.msra.mxu0 0
        %999 = vmatprep.subr.bf16.mxu0 0
        %1000 = vmatpush1.bf16.xpose.msra.mxu0 0
        %1001 = vmatprep.subr.bf16.mxu0 0
        %1002 = vmatpush1.bf16.xpose.msra.mxu0 0
        %1003 = vmatprep.subr.bf16.mxu0 0
        %1004 = vmatpush1.bf16.xpose.msra.mxu0 0
        %1005 = vmatprep.subr.bf16.mxu0 0
        %1006 = vmatpush1.bf16.xpose.msra.mxu0 0
        %1007 = vmatprep.subr.bf16.mxu0 0
        %1008 = vmatpush1.bf16.xpose.msra.mxu0 0
        %1009 = vmatprep.subr.bf16.mxu0 0
        %1010 = vmatpush1.bf16.xpose.msra.mxu0 0
        %1011 = vmatprep.subr.bf16.mxu0 0
        %1012 = vmatpush1.bf16.xpose.msra.mxu0 0
        %1013 = vmatprep.subr.bf16.mxu0 0
        %1014 = vmatpush1.bf16.xpose.msra.mxu0 0
        %1015 = vmatprep.subr.bf16.mxu0 0
        %1016 = vmatpush1.bf16.xpose.msra.mxu0 0
        %1017 = vmatprep.subr.bf16.mxu0 0
        %1018 = vmatpush1.bf16.xpose.msra.mxu0 0
        %1019 = vmatprep.subr.bf16.mxu0 0
        %1020 = vmatpush1.bf16.xpose.msra.mxu0 0
        %1021 = vmatprep.subr.bf16.mxu0 0
        %1022 = vmatpush1.bf16.xpose.msra.mxu0 0
        %1023 = vmatprep.subr.bf16.mxu0 0
        %1024 = vmatpush1.bf16.xpose.msra.mxu0 0
        %1025 = vmatprep.mubr.bf16.mxu0 0
        %1026 = vmatmul.mubr.bf16.gmra.mrb[0].mxu0 %v988
        %v1027 = vpop.f32.mrb[0].mxu0
        %v1028 = vadd.f32 0.0, %v1027
        %v1029 = vpop.f32.mrb[0].mxu0
        %v1030 = vpop.f32.mrb[0].mxu0
        %v1031 = vpop.f32.mrb[0].mxu0
        %1032 = vdwg.mxu0
        %v1033 = vmul.f32 %v1028, 0.10206208
        %v1034 = vsel %vm306, -1e+09, %v1033
        %v1035 = vadd.f32 %v1034, %v974
        %v1036 = vsel %vm458, %v1035, -inf
        %1037 = vmax.xlane.f32.xlu0 %v1036
        %v1038 = vpop.xlane.xlu0 %1037
        %v1039 = vsub.f32 %v1035, %v1038
        %v1040 = vmul.f32 %v1039, 1.442695
        %v1041 = vpow.pop %v1040
        %v1042 = vsel %vm458, %v1041, 0.0
        %1043 = vadd.xlane.f32.xlu0 %v1042
        %v1044 = vpop.xlane.xlu0 %1043
        %v1045 = vrcp.pop %v1044
        %v1046 = vmul.f32 %v1041, %v1045
        %v1047 = vpack.c.bf16 %v1046, %v1046
        %v1049 = vsel %vm458, %v1047, 0
        %v1052 = vsel %vm474, %v978, 0
        %1054 = vmatprep.subr.bf16.mxu0 0
        %1055 = vmatpush1.bf16.msra.mxu0 %v1052
        %1056 = vmatprep.subr.bf16.mxu0 0
        %1057 = vmatpush1.bf16.msra.mxu0 0
        %1058 = vmatprep.subr.bf16.mxu0 0
        %1059 = vmatpush1.bf16.msra.mxu0 0
        %1060 = vmatprep.subr.bf16.mxu0 0
        %1061 = vmatpush1.bf16.msra.mxu0 0
        %1062 = vmatprep.subr.bf16.mxu0 0
        %1063 = vmatpush1.bf16.msra.mxu0 0
        %1064 = vmatprep.subr.bf16.mxu0 0
        %1065 = vmatpush1.bf16.msra.mxu0 0
        %1066 = vmatprep.subr.bf16.mxu0 0
        %1067 = vmatpush1.bf16.msra.mxu0 0
        %1068 = vmatprep.subr.bf16.mxu0 0
        %1069 = vmatpush1.bf16.msra.mxu0 0
        %1070 = vmatprep.subr.bf16.mxu0 0
        %1071 = vmatpush1.bf16.msra.mxu0 0
        %1072 = vmatprep.subr.bf16.mxu0 0
        %1073 = vmatpush1.bf16.msra.mxu0 0
        %1074 = vmatprep.subr.bf16.mxu0 0
        %1075 = vmatpush1.bf16.msra.mxu0 0
        %1076 = vmatprep.subr.bf16.mxu0 0
        %1077 = vmatpush1.bf16.msra.mxu0 0
        %1078 = vmatprep.subr.bf16.mxu0 0
        %1079 = vmatpush1.bf16.msra.mxu0 0
        %1080 = vmatprep.subr.bf16.mxu0 0
        %1081 = vmatpush1.bf16.msra.mxu0 0
        %1082 = vmatprep.subr.bf16.mxu0 0
        %1083 = vmatpush1.bf16.msra.mxu0 0
        %1084 = vmatprep.subr.bf16.mxu0 0
        %1085 = vmatpush1.bf16.msra.mxu0 0
        %1086 = vmatprep.mubr.bf16.mxu0 0
        %1087 = vmatmul.mubr.bf16.gmra.mrb[0].mxu0 %v1049
        %v1088 = vpop.f32.mrb[0].mxu0
        %v1089 = vadd.f32 0.0, %v1088
        %v1090 = vpop.f32.mrb[0].mxu0
        %v1091 = vpop.f32.mrb[0].mxu0
        %v1092 = vpop.f32.mrb[0].mxu0
        %1093 = vdwg.mxu0
        %v1094 = vpack.c.bf16 %v957, %v957
        %1096 = vrot.lane.b32.xlu0 %v975, 32
        %v1097 = vpop.permute.xlu0 %1096
        %1098 = vrot.lane.b32.xlu0 %v976, 32
        %v1099 = vpop.permute.xlu0 %1098
        %vm1100 = vcmask 261120
        %v1101 = vsel %vm1100, %v1097, %v1099
        %1102 = vrot.lane.b32.xlu0 %v977, 96
        %v1103 = vpop.permute.xlu0 %1102
        %v1105 = vsel %vm836, %v1101, 0
        %v1108 = vsel %vm836, %v1103, 0
        %1110 = vmatprep.subr.bf16.mxu0 0
        %1111 = vmatpush1.bf16.xpose.msra.mxu0 %v1108
        %1112 = vmatprep.subr.bf16.mxu0 0
        %1113 = vmatpush1.bf16.xpose.msra.mxu0 0
        %1114 = vmatprep.subr.bf16.mxu0 0
        %1115 = vmatpush1.bf16.xpose.msra.mxu0 0
        %1116 = vmatprep.subr.bf16.mxu0 0
        %1117 = vmatpush1.bf16.xpose.msra.mxu0 0
        %1118 = vmatprep.subr.bf16.mxu0 0
        %1119 = vmatpush1.bf16.xpose.msra.mxu0 0
        %1120 = vmatprep.subr.bf16.mxu0 0
        %1121 = vmatpush1.bf16.xpose.msra.mxu0 0
        %1122 = vmatprep.subr.bf16.mxu0 0
        %1123 = vmatpush1.bf16.xpose.msra.mxu0 0
        %1124 = vmatprep.subr.bf16.mxu0 0
        %1125 = vmatpush1.bf16.xpose.msra.mxu0 0
        %1126 = vmatprep.subr.bf16.mxu0 0
        %1127 = vmatpush1.bf16.xpose.msra.mxu0 0
        %1128 = vmatprep.subr.bf16.mxu0 0
        %1129 = vmatpush1.bf16.xpose.msra.mxu0 0
        %1130 = vmatprep.subr.bf16.mxu0 0
        %1131 = vmatpush1.bf16.xpose.msra.mxu0 0
        %1132 = vmatprep.subr.bf16.mxu0 0
        %1133 = vmatpush1.bf16.xpose.msra.mxu0 0
        %1134 = vmatprep.subr.bf16.mxu0 0
        %1135 = vmatpush1.bf16.xpose.msra.mxu0 0
        %1136 = vmatprep.subr.bf16.mxu0 0
        %1137 = vmatpush1.bf16.xpose.msra.mxu0 0
        %1138 = vmatprep.subr.bf16.mxu0 0
        %1139 = vmatpush1.bf16.xpose.msra.mxu0 0
        %1140 = vmatprep.subr.bf16.mxu0 0
        %1141 = vmatpush1.bf16.xpose.msra.mxu0 0
        %1142 = vmatprep.mubr.bf16.mxu0 0
        %1143 = vmatmul.mubr.bf16.gmra.mrb[0].mxu0 %v1105
        %v1144 = vpop.f32.mrb[0].mxu0
        %v1145 = vadd.f32 0.0, %v1144
        %v1146 = vpop.f32.mrb[0].mxu0
        %v1147 = vpop.f32.mrb[0].mxu0
        %v1148 = vpop.f32.mrb[0].mxu0
        %1149 = vdwg.mxu0
        %v1150 = vmul.f32 %v1145, 0.10206208
        %v1151 = vsel %vm306, -1e+09, %v1150
        %v1152 = vadd.f32 %v1151, %v974
        %v1153 = vsel %vm458, %v1152, -inf
        %1154 = vmax.xlane.f32.xlu0 %v1153
        %v1155 = vpop.xlane.xlu0 %1154
        %v1156 = vsub.f32 %v1152, %v1155
        %v1157 = vmul.f32 %v1156, 1.442695
        %v1158 = vpow.pop %v1157
        %v1159 = vsel %vm458, %v1158, 0.0
        %1160 = vadd.xlane.f32.xlu0 %v1159
        %v1161 = vpop.xlane.xlu0 %1160
        %v1162 = vrcp.pop %v1161
        %v1163 = vmul.f32 %v1158, %v1162
        %v1164 = vpack.c.bf16 %v1163, %v1163
        %1167 = vrot.lane.b32.xlu0 %v978, 32
        %v1168 = vpop.permute.xlu0 %1167
        %1169 = vrot.lane.b32.xlu0 %v1094, 32
        %v1170 = vpop.permute.xlu0 %1169
        %v1171 = vsel %vm1100, %v1168, %v1170
        %v1173 = vsel %vm458, %v1164, 0
        %v1176 = vsel %vm474, %v1171, 0
        %1178 = vmatprep.subr.bf16.mxu0 0
        %1179 = vmatpush1.bf16.msra.mxu0 %v1176
        %1180 = vmatprep.subr.bf16.mxu0 0
        %1181 = vmatpush1.bf16.msra.mxu0 0
        %1182 = vmatprep.subr.bf16.mxu0 0
        %1183 = vmatpush1.bf16.msra.mxu0 0
        %1184 = vmatprep.subr.bf16.mxu0 0
        %1185 = vmatpush1.bf16.msra.mxu0 0
        %1186 = vmatprep.subr.bf16.mxu0 0
        %1187 = vmatpush1.bf16.msra.mxu0 0
        %1188 = vmatprep.subr.bf16.mxu0 0
        %1189 = vmatpush1.bf16.msra.mxu0 0
        %1190 = vmatprep.subr.bf16.mxu0 0
        %1191 = vmatpush1.bf16.msra.mxu0 0
        %1192 = vmatprep.subr.bf16.mxu0 0
        %1193 = vmatpush1.bf16.msra.mxu0 0
        %1194 = vmatprep.subr.bf16.mxu0 0
        %1195 = vmatpush1.bf16.msra.mxu0 0
        %1196 = vmatprep.subr.bf16.mxu0 0
        %1197 = vmatpush1.bf16.msra.mxu0 0
        %1198 = vmatprep.subr.bf16.mxu0 0
        %1199 = vmatpush1.bf16.msra.mxu0 0
        %1200 = vmatprep.subr.bf16.mxu0 0
        %1201 = vmatpush1.bf16.msra.mxu0 0
        %1202 = vmatprep.subr.bf16.mxu0 0
        %1203 = vmatpush1.bf16.msra.mxu0 0
        %1204 = vmatprep.subr.bf16.mxu0 0
        %1205 = vmatpush1.bf16.msra.mxu0 0
        %1206 = vmatprep.subr.bf16.mxu0 0
        %1207 = vmatpush1.bf16.msra.mxu0 0
        %1208 = vmatprep.subr.bf16.mxu0 0
        %1209 = vmatpush1.bf16.msra.mxu0 0
        %1210 = vmatprep.mubr.bf16.mxu0 0
        %1211 = vmatmul.mubr.bf16.gmra.mrb[0].mxu0 %v1173
        %v1212 = vpop.f32.mrb[0].mxu0
        %v1213 = vadd.f32 0.0, %v1212
        %v1214 = vpop.f32.mrb[0].mxu0
        %v1215 = vpop.f32.mrb[0].mxu0
        %v1216 = vpop.f32.mrb[0].mxu0
        %1217 = vdwg.mxu0
        %1219 = vrot.lane.b32.xlu0 %v1089, 96
        %v1220 = vpop.permute.xlu0 %1219
        %1223 = vrot.lane.b32.xlu0 %v1213, 64
        %v1224 = vpop.permute.xlu0 %1223
        %v1226 = vsel %vm836, %v642, %v1220
        %v1227 = vsel %vm641, %v1220, %v1224
        %v1228 = vpack.c.bf16 %v1226, %v1226
        %v1229 = vpack.c.bf16 %v1227, %v1227
        %v1230 = vpack.c.bf16 %v1224, %v1224
        %v1231 = vld [vmem:[%s5] sm:$0xf]
        %v1232 = vld [vmem:[%s5 + $0x4] sm:$0xf]
        %v1233 = vld [vmem:[%s5 + $0x8] sm:$0xf]
        %v1234 = vld [vmem:[%s5 + $0xc] sm:$0xf]
        %v1235 = vld [vmem:[%s5 + $0x10] sm:$0xf]
        %v1236 = vld [vmem:[%s5 + $0x14] sm:$0xf]
        %v1237 = vld [vmem:[%s5 + $0x18] sm:$0xf]
        %v1238 = vld [vmem:[%s5 + $0x1c] sm:$0xf]
        %v1239 = vld [vmem:[%s5 + $0x20] sm:$0xf]
        %v1240 = vld [vmem:[%s5 + $0x24] sm:$0xf]
        %v1241 = vld [vmem:[%s5 + $0x28] sm:$0xf]
        %v1242 = vld [vmem:[%s5 + $0x2c] sm:$0xf]
        %v1243 = vld [vmem:[%s5 + $0x30] sm:$0xf]
        %v1244 = vld [vmem:[%s5 + $0x34] sm:$0xf]
        %v1245 = vld [vmem:[%s5 + $0x38] sm:$0xf]
        %v1246 = vld [vmem:[%s5 + $0x3c] sm:$0xf]
        %v1247 = vld [vmem:[%s5 + $0x40] sm:$0xf]
        %v1248 = vld [vmem:[%s5 + $0x44] sm:$0xf]
        %v1249 = vld [vmem:[%s5 + $0x48] sm:$0xf]
        %v1250 = vld [vmem:[%s5 + $0x4c] sm:$0xf]
        %v1251 = vld [vmem:[%s5 + $0x50] sm:$0xf]
        %v1252 = vld [vmem:[%s5 + $0x54] sm:$0xf]
        %v1253 = vld [vmem:[%s5 + $0x58] sm:$0xf]
        %v1254 = vld [vmem:[%s5 + $0x5c] sm:$0xf]
        %v1255 = vld [vmem:[%s5 + $0x60] sm:$0xf]
        %v1256 = vld [vmem:[%s5 + $0x64] sm:$0xf]
        %v1257 = vld [vmem:[%s5 + $0x68] sm:$0xf]
        %v1258 = vld [vmem:[%s5 + $0x6c] sm:$0xf]
        %v1259 = vld [vmem:[%s5 + $0x70] sm:$0xf]
        %v1260 = vld [vmem:[%s5 + $0x74] sm:$0xf]
        %v1261 = vld [vmem:[%s5 + $0x78] sm:$0xf]
        %v1262 = vld [vmem:[%s5 + $0x7c] sm:$0xf]
        %v1263 = vld [vmem:[%s5 + $0x80] sm:$0xf]
        %v1264 = vld [vmem:[%s5 + $0x84] sm:$0xf]
        %v1265 = vld [vmem:[%s5 + $0x88] sm:$0xf]
        %v1266 = vld [vmem:[%s5 + $0x8c] sm:$0xf]
        %v1267 = vld [vmem:[%s6] sm:$0x1]
        %v1269 = vlaneseq
        %v1270 = vshrl.u32 %v1269, 7
        %v1271 = vsub.s32 0, %v1270
        %v1272 = vrot.slane %v1267, %v1271
        %v1310 = vunpack.c.l.b16 %v1231
        %v1311 = vunpack.c.l.b16 %v1232
        %v1312 = vunpack.c.l.b16 %v1233
        %v1313 = vunpack.c.l.b16 %v1234
        %v1314 = vunpack.c.l.b16 %v1235
        %v1315 = vunpack.c.l.b16 %v1236
        %v1316 = vunpack.c.l.b16 %v1237
        %v1317 = vunpack.c.l.b16 %v1238
        %v1318 = vunpack.c.l.b16 %v1239
        %v1319 = vunpack.c.l.b16 %v1240
        %v1320 = vunpack.c.l.b16 %v1241
        %v1321 = vunpack.c.l.b16 %v1242
        %v1322 = vunpack.c.l.b16 %v1243
        %v1323 = vunpack.c.l.b16 %v1244
        %v1324 = vunpack.c.l.b16 %v1245
        %v1325 = vunpack.c.l.b16 %v1246
        %v1326 = vunpack.c.l.b16 %v1247
        %v1327 = vunpack.c.l.b16 %v1248
        %v1328 = vunpack.c.l.b16 %v1249
        %v1329 = vunpack.c.l.b16 %v1250
        %v1330 = vunpack.c.l.b16 %v1251
        %v1331 = vunpack.c.l.b16 %v1252
        %v1332 = vunpack.c.l.b16 %v1253
        %v1333 = vunpack.c.l.b16 %v1254
        %v1334 = vunpack.c.l.b16 %v1255
        %v1335 = vunpack.c.l.b16 %v1256
        %v1336 = vunpack.c.l.b16 %v1257
        %v1337 = vunpack.c.l.b16 %v1258
        %v1338 = vunpack.c.l.b16 %v1259
        %v1339 = vunpack.c.l.b16 %v1260
        %v1340 = vunpack.c.l.b16 %v1261
        %v1341 = vunpack.c.l.b16 %v1262
        %v1342 = vunpack.c.l.b16 %v1263
        %v1343 = vunpack.c.l.b16 %v1264
        %v1344 = vunpack.c.l.b16 %v1265
        %v1345 = vunpack.c.l.b16 %v1266
        %v1346 = vpack.c.b16 %v1311, %v1310
        %v1347 = vpack.c.b16 %v1313, %v1312
        %v1348 = vpack.c.b16 %v1315, %v1314
        %v1349 = vpack.c.b16 %v1317, %v1316
        %v1350 = vpack.c.b16 %v1319, %v1318
        %v1351 = vpack.c.b16 %v1321, %v1320
        %v1352 = vpack.c.b16 %v1323, %v1322
        %v1353 = vpack.c.b16 %v1325, %v1324
        %v1354 = vpack.c.b16 %v1327, %v1326
        %v1355 = vpack.c.b16 %v1329, %v1328
        %v1356 = vpack.c.b16 %v1331, %v1330
        %v1357 = vpack.c.b16 %v1333, %v1332
        %v1358 = vpack.c.b16 %v1335, %v1334
        %v1359 = vpack.c.b16 %v1337, %v1336
        %v1360 = vpack.c.b16 %v1339, %v1338
        %v1361 = vpack.c.b16 %v1341, %v1340
        %v1362 = vpack.c.b16 %v1343, %v1342
        %v1363 = vpack.c.b16 %v1345, %v1344
        %v1383 = vsel %vm342, %v1230, 0
        %1385 = vmatprep.subr.bf16.mxu0 0
        %1386 = vmatpush1.bf16.msra.mxu0 %v1346
        %1387 = vmatprep.subr.bf16.mxu0 0
        %1388 = vmatpush1.bf16.msra.mxu0 %v1347
        %1389 = vmatprep.subr.bf16.mxu0 0
        %1390 = vmatpush1.bf16.msra.mxu0 %v1348
        %1391 = vmatprep.subr.bf16.mxu0 0
        %1392 = vmatpush1.bf16.msra.mxu0 %v1349
        %1393 = vmatprep.subr.bf16.mxu0 0
        %1394 = vmatpush1.bf16.msra.mxu0 %v1350
        %1395 = vmatprep.subr.bf16.mxu0 0
        %1396 = vmatpush1.bf16.msra.mxu0 %v1351
        %1397 = vmatprep.subr.bf16.mxu0 0
        %1398 = vmatpush1.bf16.msra.mxu0 %v1352
        %1399 = vmatprep.subr.bf16.mxu0 0
        %1400 = vmatpush1.bf16.msra.mxu0 %v1353
        %1401 = vmatprep.subr.bf16.mxu0 0
        %1402 = vmatpush1.bf16.msra.mxu0 %v1354
        %1403 = vmatprep.subr.bf16.mxu0 0
        %1404 = vmatpush1.bf16.msra.mxu0 %v1355
        %1405 = vmatprep.subr.bf16.mxu0 0
        %1406 = vmatpush1.bf16.msra.mxu0 %v1356
        %1407 = vmatprep.subr.bf16.mxu0 0
        %1408 = vmatpush1.bf16.msra.mxu0 %v1357
        %1409 = vmatprep.subr.bf16.mxu0 0
        %1410 = vmatpush1.bf16.msra.mxu0 %v1358
        %1411 = vmatprep.subr.bf16.mxu0 0
        %1412 = vmatpush1.bf16.msra.mxu0 %v1359
        %1413 = vmatprep.subr.bf16.mxu0 0
        %1414 = vmatpush1.bf16.msra.mxu0 %v1360
        %1415 = vmatprep.subr.bf16.mxu0 0
        %1416 = vmatpush1.bf16.msra.mxu0 %v1361
        %1417 = vmatprep.mubr.bf16.mxu0 %v1229
        %1418 = vmatmul.mubr.bf16.gmra.mrb[0].mxu0 %v1228
        %v1419 = vpop.f32.mrb[0].mxu0
        %v1420 = vadd.f32 %v1272, %v1419
        %v1421 = vpop.f32.mrb[0].mxu0
        %v1422 = vpop.f32.mrb[0].mxu0
        %v1423 = vpop.f32.mrb[0].mxu0
        %1424 = vdwg.mxu0
        %1425 = vmatprep.subr.bf16.mxu0 0
        %1426 = vmatpush1.bf16.msra.mxu0 %v1362
        %1427 = vmatprep.subr.bf16.mxu0 0
        %1428 = vmatpush1.bf16.msra.mxu0 %v1363
        %1429 = vmatprep.subr.bf16.mxu0 0
        %1430 = vmatpush1.bf16.msra.mxu0 0
        %1431 = vmatprep.subr.bf16.mxu0 0
        %1432 = vmatpush1.bf16.msra.mxu0 0
        %1433 = vmatprep.subr.bf16.mxu0 0
        %1434 = vmatpush1.bf16.msra.mxu0 0
        %1435 = vmatprep.subr.bf16.mxu0 0
        %1436 = vmatpush1.bf16.msra.mxu0 0
        %1437 = vmatprep.subr.bf16.mxu0 0
        %1438 = vmatpush1.bf16.msra.mxu0 0
        %1439 = vmatprep.subr.bf16.mxu0 0
        %1440 = vmatpush1.bf16.msra.mxu0 0
        %1441 = vmatprep.subr.bf16.mxu0 0
        %1442 = vmatpush1.bf16.msra.mxu0 0
        %1443 = vmatprep.subr.bf16.mxu0 0
        %1444 = vmatpush1.bf16.msra.mxu0 0
        %1445 = vmatprep.subr.bf16.mxu0 0
        %1446 = vmatpush1.bf16.msra.mxu0 0
        %1447 = vmatprep.subr.bf16.mxu0 0
        %1448 = vmatpush1.bf16.msra.mxu0 0
        %1449 = vmatprep.subr.bf16.mxu0 0
        %1450 = vmatpush1.bf16.msra.mxu0 0
        %1451 = vmatprep.subr.bf16.mxu0 0
        %1452 = vmatpush1.bf16.msra.mxu0 0
        %1453 = vmatprep.subr.bf16.mxu0 0
        %1454 = vmatpush1.bf16.msra.mxu0 0
        %1455 = vmatprep.subr.bf16.mxu0 0
        %1456 = vmatpush1.bf16.msra.mxu0 0
        %1457 = vmatprep.mubr.bf16.mxu0 0
        %1458 = vmatmul.mubr.bf16.gmra.mrb[0].mxu0 %v1383
        %v1459 = vpop.f32.mrb[0].mxu0
        %v1460 = vadd.f32 %v1420, %v1459
        %v1461 = vpop.f32.mrb[0].mxu0
        %v1462 = vpop.f32.mrb[0].mxu0
        %v1463 = vpop.f32.mrb[0].mxu0
        %1464 = vdwg.mxu0
        %1465 = vst [vmem:[%s296] sm:$0xff] %v1460
        %s1466 = sand.u32 %s183, 1
        %s1467 = scalar_lea.sflag [#allocation3], %s1466
        %s1468 = sand.u32 %s183, 1
        %s1469 = smul.addr %s1468, 8
        %s1470 = scalar_lea.vmem [#allocation7], %s1469
        // Predicated region
        $region57: #{induction_head_forward.1} parent=47 // pred_check
          %p1471 = pneg %p193
        $region58: #{induction_head_forward.1} parent=47 // pred_check_branch
          %1473 = sbr.rel (%p1471) target = $region60
        $region59: #{induction_head_forward.1} parent=47 // pred_region
          %s1475 = ssub.s32 128, 128
          %1476 = vsyncadd %s1467, %s1475
          %s1477 = smul.addr %s23, 128
          %s1478 = scalar_lea.hbm %s7, %s1477
          %s1480 = sshll.u32 %s1470, 4
          %s1481 = int_to_ptr.vmem [resolvable:$true] %s1480
          %1483 = dma.vmem_to_hbm [thread:$0]  %s1481, 128, %s1478, %s1467
        $region60: #{induction_head_forward.1} parent=47 // pred_fallthru
          _
      $region48: #{induction_head_forward.1} parent=5 // pred_fallthru
        _
      %p1484 = scmp.le.s32.totalorder 2, %s18
      // Predicated region
      $region61: #{induction_head_forward.1} parent=5 // pred_check
        %p1485 = pneg %p1484
      $region62: #{induction_head_forward.1} parent=5 // pred_check_branch
        %1487 = sbr.rel (%p1485) target = $region64
      $region63: #{induction_head_forward.1} parent=5 // pred_region
        %s1488 = ssub.s32 %s18, 2
        // Predicated region
        $region65: #{induction_head_forward.1} parent=63 // pred_check
          %p1489 = pneg %p199
        $region66: #{induction_head_forward.1} parent=63 // pred_check_branch
          %1491 = sbr.rel (%p1489) target = $region68
        $region67: #{induction_head_forward.1} parent=63 // pred_region
          %s1492 = sand.u32 %s184, 1
          %s1493 = scalar_lea.sflag [#allocation3], %s1492
          %s1494 = sand.u32 %s184, 1
          %s1495 = smul.addr %s1494, 8
          %s1496 = scalar_lea.vmem [#allocation7], %s1495
          %1497 = dma.done %s1493, 128
        $region68: #{induction_head_forward.1} parent=63 // pred_fallthru
          _
      $region64: #{induction_head_forward.1} parent=5 // pred_fallthru
        _
    $region6: #{induction_head_forward.1} parent=1 // loop_footer
      %s22 = sadd.s32 1, %s18
    $region7: #{induction_head_forward.1} parent=1 // loop_footer_branch
      %17 = sbr.rel target = $region3
    $region8: #{induction_head_forward.1} parent=1 // loop_exit
      _
    %1498 = vsyncpa [#allocation3], 1
    %s1499 = scalar_lea.sflag [#allocation3], 1
    %1500 = vsyncpa %s1499, 1
    %1501 = vsyncpa [#allocation4], 1
    %s1502 = scalar_lea.sflag [#allocation4], 1
    %1503 = vsyncpa %s1502, 1
    %1504 = vsyncpa [#allocation6], 1

</llo_original>
